<compile_context>
chip_gen: v6e
topology: v6e:2x2x1
jax: 0.10.0
libtpu: 0.0.40
codegen_flags: <defaults>
</compile_context>

<pallas_src>
import jax
import jax.numpy as jnp
import numpy as np
from jax.experimental import pallas as pl
from jax.experimental.pallas import tpu as pltpu


def _gin_kernel(eps_ref, x_ref, e_ref, a_ref,
                we_ref, be_ref, wrn_ref, wre_ref, br_ref,
                w0_ref, b0_ref, w1_ref, b1_ref,
                out_ref):
    # Upcast the bf16 DMA'd activations to f32 immediately: all arithmetic is
    # f32 (v5e VPU has no bf16) and the MXU accumulates in f32.
    X = x_ref[...].astype(jnp.float32)          # (BB, m, h)
    A = a_ref[...].astype(jnp.float32)          # (BB, m, m)
    BB, m, h = X.shape
    e = e_ref.shape[-1]

    relu = lambda v: jnp.maximum(v, 0.0)

    # ---- edge_mapper: Linear(e, e) + act over all BB*m*m edges -------------
    # (leading-dim merge only: m == 8 -> layout-free reshape)
    Ef = jnp.reshape(e_ref[...], (BB * m * m, e)).astype(jnp.float32)
    Ef = relu(jnp.dot(Ef, we_ref[...], preferred_element_type=jnp.float32)
              + be_ref[...])
    E2 = jnp.reshape(Ef, (BB, m, m, e))

    # ---- message aggregation over source node i ----------------------------
    # msg[g, j, :] = sum_i A[g, i, j] * cat(X[g, i, :], E2[g, i, j, :])
    # Unrolled VPU FMA over the small static i axis: no (BB, m, m, h+e)
    # broadcast temporary and no per-graph tiny MXU matmuls.
    a0 = A[:, 0, :, None]                       # (BB, m, 1)
    msg_node = a0 * X[:, 0, None, :]            # (BB, m, h)
    msg_edge = a0 * E2[:, 0]                    # (BB, m, e)
    for i in range(1, m):
        ai = A[:, i, :, None]
        msg_node = msg_node + ai * X[:, i, None, :]
        msg_edge = msg_edge + ai * E2[:, i]

    # ---- residual_mapping: Linear(h+e, h) + act, weight pre-split so there
    #      is no lane-axis concat of non-128-aligned operands.
    mn = jnp.reshape(msg_node, (BB * m, h))
    me = jnp.reshape(msg_edge, (BB * m, e))
    res = relu(jnp.dot(mn, wrn_ref[...], preferred_element_type=jnp.float32)
               + jnp.dot(me, wre_ref[...], preferred_element_type=jnp.float32)
               + br_ref[...])

    out = (1.0 + eps_ref[0]) * jnp.reshape(X, (BB * m, h)) + res

    # ---- W_0 -> act -> (dropout = id) -> W_1 -> act -> (dropout = id) ------
    out = relu(jnp.dot(out, w0_ref[...], preferred_element_type=jnp.float32)
               + b0_ref[...])
    out = relu(jnp.dot(out, w1_ref[...], preferred_element_type=jnp.float32)
               + b1_ref[...])

    out_ref[...] = jnp.reshape(out, (BB, m, h)).astype(out_ref.dtype)


def poly_gin_adj(X, E, A, params, *, block_b=512, input_dtype=jnp.bfloat16):
    """Pallas forward of poly_GIN_adj (eval mode).

    params = (eps, We, be, Wr, br, W0, b0, W1, b1); Linear weights are
    pre-transposed to [in, out].

    block_b: graphs per grid step.  ~512 is the sweet spot: ~2 MiB of DMA per
    step (amortizes the ~0.35 us per-step overhead, >85%-of-roofline regime)
    and 4096-row matmuls, while the f32 working set stays ~10-20 MiB.  The
    wrapper clamps it so there are at least 2 grid blocks (v7x dual-TC) and
    sizes vmem_limit_bytes for the chosen block.

    input_dtype: HBM/DMA dtype for X/E/A (bf16 halves the dominant HBM
    traffic; pass jnp.float32 to stay bit-close to the PyTorch f32 forward).
    """
    b, m, h = X.shape
    e = E.shape[-1]
    eps, We, be, Wr, br, W0, b0, W1, b1 = params

    # Residual weight split into node/edge halves (no lane-axis concat).
    Wr_node = Wr[:h]                            # (h, h)
    Wr_edge = Wr[h:]                            # (e, h)

    Xc = X.astype(input_dtype)
    Ec = E.astype(input_dtype)
    Ac = A.astype(input_dtype)

    # Graphs per grid step: never more than the batch, and >= 2 blocks when
    # b >= 2.  No jnp.pad: Pallas handles the ragged last block (OOB reads are
    # per-graph-independent garbage, OOB writes are dropped).
    BB = max(1, min(int(block_b), -(-b // 2) if b > 1 else b))
    nblk = -(-b // BB)

    isz = np.dtype(input_dtype).itemsize
    # Rough VMEM budget: double-buffered I/O blocks + f32 intermediates + weights.
    blk_io = BB * (m * h + m * m * e + m * m) * isz + BB * m * h * 4
    f32_tmps = BB * m * m * e * 4 * 2 + BB * m * (h + e) * 4 * 4
    weights_b = 4 * (e * e + e + (h + e) * h + h + 2 * h * h + 2 * h)
    vmem_limit = int(min(max(2 * blk_io + f32_tmps + weights_b + (4 << 20),
                             16 << 20), 48 << 20))

    in_specs = [
        pl.BlockSpec(memory_space=pltpu.SMEM),                    # eps (1,)
        pl.BlockSpec((BB, m, h), lambda i: (i, 0, 0)),            # X
        pl.BlockSpec((BB, m, m, e), lambda i: (i, 0, 0, 0)),      # E
        pl.BlockSpec((BB, m, m), lambda i: (i, 0, 0)),            # A
        pl.BlockSpec((e, e), lambda i: (0, 0)),                   # We
        pl.BlockSpec((1, e), lambda i: (0, 0)),                   # be
        pl.BlockSpec((h, h), lambda i: (0, 0)),                   # Wr_node
        pl.BlockSpec((e, h), lambda i: (0, 0)),                   # Wr_edge
        pl.BlockSpec((1, h), lambda i: (0, 0)),                   # br
        pl.BlockSpec((h, h), lambda i: (0, 0)),                   # W0
        pl.BlockSpec((1, h), lambda i: (0, 0)),                   # b0
        pl.BlockSpec((h, h), lambda i: (0, 0)),                   # W1
        pl.BlockSpec((1, h), lambda i: (0, 0)),                   # b1
    ]
    out_spec = pl.BlockSpec((BB, m, h), lambda i: (i, 0, 0))

    flops = int(b * (2 * m * m * e * e          # edge_mapper
                     + 2 * m * m * h            # node aggregation (VPU FMA)
                     + 2 * m * m * e            # edge aggregation
                     + 2 * m * (h + e) * h      # residual_mapping
                     + 4 * m * h * h))          # W_0, W_1
    bytes_accessed = int(isz * b * (m * h + m * m * e + m * m)   # X, E, A (bf16)
                         + 4 * b * m * h                         # out (f32)
                         + weights_b)

    out = pl.pallas_call(
        _gin_kernel,
        out_shape=jax.ShapeDtypeStruct((b, m, h), jnp.float32),
        grid=(nblk,),
        in_specs=in_specs,
        out_specs=out_spec,
        compiler_params=pltpu.CompilerParams(
            dimension_semantics=("parallel",),    # shard batch blocks over TCs
            vmem_limit_bytes=vmem_limit),
        cost_estimate=pl.CostEstimate(
            flops=flops, transcendentals=0, bytes_accessed=bytes_accessed),
    )(eps, Xc, Ec, Ac, We, be, Wr_node, Wr_edge, br, W0, b0, W1, b1)
    return out


def ref_forward(X, E, A, params):
    """Pure-JAX reference matching the PyTorch forward (eval mode)."""
    eps, We, be, Wr, br, W0, b0, W1, b1 = params
    relu = lambda v: jnp.maximum(v, 0.0)
    b, m, h = X.shape
    E2 = relu(jnp.einsum('bijd,de->bije', E, We) + be)            # edge_mapper
    Xexp = jnp.broadcast_to(X[:, :, None, :], (b, m, m, h))
    cat = jnp.concatenate([Xexp, E2], axis=3)
    msg = jnp.sum(A[..., None] * cat, axis=1)                     # sum over i
    Xe = (1.0 + eps[0]) * X
    out = Xe + relu(msg @ Wr + br)
    out = relu(out @ W0 + b0)
    out = relu(out @ W1 + b1)
    return out


if __name__ == "__main__":
    key = jax.random.PRNGKey(0)
    # Per-graph sizes the module implies; b=10 exercises batch blocking and the
    # ragged (un-padded) last block.
    b, m, h, e = 10, 8, 32, 16
    ks = jax.random.split(key, 11)

    X = jax.random.normal(ks[0], (b, m, h), jnp.float32)
    E = jax.random.normal(ks[1], (b, m, m, e), jnp.float32)
    A = (jax.random.uniform(ks[2], (b, m, m)) > 0.5).astype(jnp.float32)

    scale = 0.1
    eps = jnp.zeros((1,), jnp.float32)                            # nn.Parameter(zeros(1))
    We = scale * jax.random.normal(ks[3], (e, e), jnp.float32)
    be = scale * jax.random.normal(ks[4], (1, e), jnp.float32)
    Wr = scale * jax.random.normal(ks[5], (h + e, h), jnp.float32)
    br = scale * jax.random.normal(ks[6], (1, h), jnp.float32)
    W0 = scale * jax.random.normal(ks[7], (h, h), jnp.float32)
    b0 = scale * jax.random.normal(ks[8], (1, h), jnp.float32)
    W1 = scale * jax.random.normal(ks[9], (h, h), jnp.float32)
    b1 = scale * jax.random.normal(ks[10], (1, h), jnp.float32)
    params = (eps, We, be, Wr, br, W0, b0, W1, b1)

    # Reference on the same bf16-rounded inputs the kernel DMAs (math all f32).
    q = lambda t: t.astype(jnp.bfloat16).astype(jnp.float32)
    ref = ref_forward(q(X), q(E), q(A), params)

    # Default config: block_b clamped to ceil(b/2)=5 -> 2 full grid blocks.
    out = jax.block_until_ready(poly_gin_adj(X, E, A, params))
    assert out.shape == (b, m, h) and out.dtype == jnp.float32
    assert jnp.allclose(out, ref, atol=2e-3, rtol=2e-3), \
        float(jnp.max(jnp.abs(out - ref)))

    # Small block_b -> 3 grid blocks with a ragged last block (2 valid graphs):
    # exercises the no-padding tail path.
    out2 = jax.block_until_ready(poly_gin_adj(X, E, A, params, block_b=4))
    assert jnp.allclose(out2, ref, atol=2e-3, rtol=2e-3), \
        float(jnp.max(jnp.abs(out2 - ref)))

    print("KERNEL_OK")
</pallas_src>

<mosaic_0001>
module attributes {stable_mosaic.version = 11 : i64} {
  func.func @_gin_kernel(%arg0: i32, %arg1: memref<1xf32, #tpu.memory_space<smem>>, %arg2: memref<5x8x32xbf16, #tpu.memory_space<vmem>>, %arg3: memref<5x8x8x16xbf16, #tpu.memory_space<vmem>>, %arg4: memref<5x8x8xbf16, #tpu.memory_space<vmem>>, %arg5: memref<16x16xf32, #tpu.memory_space<vmem>>, %arg6: memref<1x16xf32, #tpu.memory_space<vmem>>, %arg7: memref<32x32xf32, #tpu.memory_space<vmem>>, %arg8: memref<16x32xf32, #tpu.memory_space<vmem>>, %arg9: memref<1x32xf32, #tpu.memory_space<vmem>>, %arg10: memref<32x32xf32, #tpu.memory_space<vmem>>, %arg11: memref<1x32xf32, #tpu.memory_space<vmem>>, %arg12: memref<32x32xf32, #tpu.memory_space<vmem>>, %arg13: memref<1x32xf32, #tpu.memory_space<vmem>>, %arg14: memref<5x8x32xf32, #tpu.memory_space<vmem>>) attributes {dimension_semantics = [#tpu.dimension_semantics<parallel>], iteration_bounds = array<i64: 2>, scalar_prefetch = 0 : i64, scratch_operands = 0 : i64, tpu.core_type = #tpu.core_type<tc>, window_params = [{transform_indices = @transform_0, window_bounds = array<i64: 1>}, {transform_indices = @transform_1, window_bounds = array<i64: 5, 8, 32>}, {transform_indices = @transform_2, window_bounds = array<i64: 5, 8, 8, 16>}, {transform_indices = @transform_3, window_bounds = array<i64: 5, 8, 8>}, {pipeline_mode = #tpu.pipeline_mode<synchronous>, transform_indices = @transform_4, window_bounds = array<i64: 16, 16>}, {pipeline_mode = #tpu.pipeline_mode<synchronous>, transform_indices = @transform_5, window_bounds = array<i64: 1, 16>}, {pipeline_mode = #tpu.pipeline_mode<synchronous>, transform_indices = @transform_6, window_bounds = array<i64: 32, 32>}, {pipeline_mode = #tpu.pipeline_mode<synchronous>, transform_indices = @transform_7, window_bounds = array<i64: 16, 32>}, {pipeline_mode = #tpu.pipeline_mode<synchronous>, transform_indices = @transform_8, window_bounds = array<i64: 1, 32>}, {pipeline_mode = #tpu.pipeline_mode<synchronous>, transform_indices = @transform_9, window_bounds = array<i64: 32, 32>}, {pipeline_mode = #tpu.pipeline_mode<synchronous>, transform_indices = @transform_10, window_bounds = array<i64: 1, 32>}, {pipeline_mode = #tpu.pipeline_mode<synchronous>, transform_indices = @transform_11, window_bounds = array<i64: 32, 32>}, {pipeline_mode = #tpu.pipeline_mode<synchronous>, transform_indices = @transform_12, window_bounds = array<i64: 1, 32>}, {transform_indices = @transform_13, window_bounds = array<i64: 5, 8, 32>}]} {
    %c0 = arith.constant 0 : index
    %c0_0 = arith.constant 0 : index
    %c0_1 = arith.constant 0 : index
    %0 = vector.load %arg2[%c0, %c0_0, %c0_1] : memref<5x8x32xbf16, #tpu.memory_space<vmem>>, vector<5x8x32xbf16>
    %1 = arith.extf %0 : vector<5x8x32xbf16> to vector<5x8x32xf32>
    %c0_2 = arith.constant 0 : index
    %c0_3 = arith.constant 0 : index
    %c0_4 = arith.constant 0 : index
    %2 = vector.load %arg4[%c0_2, %c0_3, %c0_4] : memref<5x8x8xbf16, #tpu.memory_space<vmem>>, vector<5x8x8xbf16>
    %3 = arith.extf %2 : vector<5x8x8xbf16> to vector<5x8x8xf32>
    %c0_5 = arith.constant 0 : index
    %c0_6 = arith.constant 0 : index
    %c0_7 = arith.constant 0 : index
    %c0_8 = arith.constant 0 : index
    %4 = vector.load %arg3[%c0_5, %c0_6, %c0_7, %c0_8] : memref<5x8x8x16xbf16, #tpu.memory_space<vmem>>, vector<5x8x8x16xbf16>
    %5 = vector.shape_cast %4 : vector<5x8x8x16xbf16> to vector<320x16xbf16>
    %6 = arith.extf %5 : vector<320x16xbf16> to vector<320x16xf32>
    %c0_9 = arith.constant 0 : index
    %c0_10 = arith.constant 0 : index
    %7 = vector.load %arg5[%c0_9, %c0_10] : memref<16x16xf32, #tpu.memory_space<vmem>>, vector<16x16xf32>
    %cst = arith.constant dense<0.000000e+00> : vector<320x16xf32>
    %8 = tpu.matmul %6, %7, %cst {dimension_numbers = #tpu.dot_dimension_numbers<[1], [0], [0], [1], [0, 0, 1, 1], [], []>} : vector<320x16xf32>, vector<16x16xf32>, vector<320x16xf32> -> vector<320x16xf32>
    %c0_11 = arith.constant 0 : index
    %c0_12 = arith.constant 0 : index
    %9 = vector.load %arg6[%c0_11, %c0_12] : memref<1x16xf32, #tpu.memory_space<vmem>>, vector<1x16xf32>
    %10 = vector.broadcast %9 : vector<1x16xf32> to vector<320x16xf32>
    %11 = arith.addf %8, %10 : vector<320x16xf32>
    %cst_13 = arith.constant 0.000000e+00 : f32
    %12 = vector.broadcast %cst_13 : f32 to vector<320x16xf32>
    %13 = arith.maximumf %11, %12 : vector<320x16xf32>
    %14 = vector.shape_cast %13 : vector<320x16xf32> to vector<5x8x8x16xf32>
    %15 = vector.extract_strided_slice %3 {offsets = [0, 0, 0], sizes = [5, 1, 8], strides = [1, 1, 1]} : vector<5x8x8xf32> to vector<5x1x8xf32>
    %16 = vector.shape_cast %15 : vector<5x1x8xf32> to vector<5x8xf32>
    %17 = vector.shape_cast %16 : vector<5x8xf32> to vector<5x8x1xf32>
    %18 = vector.extract_strided_slice %1 {offsets = [0, 0, 0], sizes = [5, 1, 32], strides = [1, 1, 1]} : vector<5x8x32xf32> to vector<5x1x32xf32>
    %19 = vector.shape_cast %18 : vector<5x1x32xf32> to vector<5x32xf32>
    %20 = vector.shape_cast %19 : vector<5x32xf32> to vector<5x1x32xf32>
    %21 = vector.broadcast %17 : vector<5x8x1xf32> to vector<5x8x32xf32>
    %22 = vector.broadcast %20 : vector<5x1x32xf32> to vector<5x8x32xf32>
    %23 = arith.mulf %21, %22 : vector<5x8x32xf32>
    %24 = vector.extract_strided_slice %14 {offsets = [0, 0, 0, 0], sizes = [5, 1, 8, 16], strides = [1, 1, 1, 1]} : vector<5x8x8x16xf32> to vector<5x1x8x16xf32>
    %25 = vector.shape_cast %24 : vector<5x1x8x16xf32> to vector<5x8x16xf32>
    %26 = vector.broadcast %17 : vector<5x8x1xf32> to vector<5x8x16xf32>
    %27 = arith.mulf %26, %25 : vector<5x8x16xf32>
    %28 = vector.extract_strided_slice %3 {offsets = [0, 1, 0], sizes = [5, 1, 8], strides = [1, 1, 1]} : vector<5x8x8xf32> to vector<5x1x8xf32>
    %29 = vector.shape_cast %28 : vector<5x1x8xf32> to vector<5x8xf32>
    %30 = vector.shape_cast %29 : vector<5x8xf32> to vector<5x8x1xf32>
    %31 = vector.extract_strided_slice %1 {offsets = [0, 1, 0], sizes = [5, 1, 32], strides = [1, 1, 1]} : vector<5x8x32xf32> to vector<5x1x32xf32>
    %32 = vector.shape_cast %31 : vector<5x1x32xf32> to vector<5x32xf32>
    %33 = vector.shape_cast %32 : vector<5x32xf32> to vector<5x1x32xf32>
    %34 = vector.broadcast %30 : vector<5x8x1xf32> to vector<5x8x32xf32>
    %35 = vector.broadcast %33 : vector<5x1x32xf32> to vector<5x8x32xf32>
    %36 = arith.mulf %34, %35 : vector<5x8x32xf32>
    %37 = arith.addf %23, %36 : vector<5x8x32xf32>
    %38 = vector.extract_strided_slice %14 {offsets = [0, 1, 0, 0], sizes = [5, 1, 8, 16], strides = [1, 1, 1, 1]} : vector<5x8x8x16xf32> to vector<5x1x8x16xf32>
    %39 = vector.shape_cast %38 : vector<5x1x8x16xf32> to vector<5x8x16xf32>
    %40 = vector.broadcast %30 : vector<5x8x1xf32> to vector<5x8x16xf32>
    %41 = arith.mulf %40, %39 : vector<5x8x16xf32>
    %42 = arith.addf %27, %41 : vector<5x8x16xf32>
    %43 = vector.extract_strided_slice %3 {offsets = [0, 2, 0], sizes = [5, 1, 8], strides = [1, 1, 1]} : vector<5x8x8xf32> to vector<5x1x8xf32>
    %44 = vector.shape_cast %43 : vector<5x1x8xf32> to vector<5x8xf32>
    %45 = vector.shape_cast %44 : vector<5x8xf32> to vector<5x8x1xf32>
    %46 = vector.extract_strided_slice %1 {offsets = [0, 2, 0], sizes = [5, 1, 32], strides = [1, 1, 1]} : vector<5x8x32xf32> to vector<5x1x32xf32>
    %47 = vector.shape_cast %46 : vector<5x1x32xf32> to vector<5x32xf32>
    %48 = vector.shape_cast %47 : vector<5x32xf32> to vector<5x1x32xf32>
    %49 = vector.broadcast %45 : vector<5x8x1xf32> to vector<5x8x32xf32>
    %50 = vector.broadcast %48 : vector<5x1x32xf32> to vector<5x8x32xf32>
    %51 = arith.mulf %49, %50 : vector<5x8x32xf32>
    %52 = arith.addf %37, %51 : vector<5x8x32xf32>
    %53 = vector.extract_strided_slice %14 {offsets = [0, 2, 0, 0], sizes = [5, 1, 8, 16], strides = [1, 1, 1, 1]} : vector<5x8x8x16xf32> to vector<5x1x8x16xf32>
    %54 = vector.shape_cast %53 : vector<5x1x8x16xf32> to vector<5x8x16xf32>
    %55 = vector.broadcast %45 : vector<5x8x1xf32> to vector<5x8x16xf32>
    %56 = arith.mulf %55, %54 : vector<5x8x16xf32>
    %57 = arith.addf %42, %56 : vector<5x8x16xf32>
    %58 = vector.extract_strided_slice %3 {offsets = [0, 3, 0], sizes = [5, 1, 8], strides = [1, 1, 1]} : vector<5x8x8xf32> to vector<5x1x8xf32>
    %59 = vector.shape_cast %58 : vector<5x1x8xf32> to vector<5x8xf32>
    %60 = vector.shape_cast %59 : vector<5x8xf32> to vector<5x8x1xf32>
    %61 = vector.extract_strided_slice %1 {offsets = [0, 3, 0], sizes = [5, 1, 32], strides = [1, 1, 1]} : vector<5x8x32xf32> to vector<5x1x32xf32>
    %62 = vector.shape_cast %61 : vector<5x1x32xf32> to vector<5x32xf32>
    %63 = vector.shape_cast %62 : vector<5x32xf32> to vector<5x1x32xf32>
    %64 = vector.broadcast %60 : vector<5x8x1xf32> to vector<5x8x32xf32>
    %65 = vector.broadcast %63 : vector<5x1x32xf32> to vector<5x8x32xf32>
    %66 = arith.mulf %64, %65 : vector<5x8x32xf32>
    %67 = arith.addf %52, %66 : vector<5x8x32xf32>
    %68 = vector.extract_strided_slice %14 {offsets = [0, 3, 0, 0], sizes = [5, 1, 8, 16], strides = [1, 1, 1, 1]} : vector<5x8x8x16xf32> to vector<5x1x8x16xf32>
    %69 = vector.shape_cast %68 : vector<5x1x8x16xf32> to vector<5x8x16xf32>
    %70 = vector.broadcast %60 : vector<5x8x1xf32> to vector<5x8x16xf32>
    %71 = arith.mulf %70, %69 : vector<5x8x16xf32>
    %72 = arith.addf %57, %71 : vector<5x8x16xf32>
    %73 = vector.extract_strided_slice %3 {offsets = [0, 4, 0], sizes = [5, 1, 8], strides = [1, 1, 1]} : vector<5x8x8xf32> to vector<5x1x8xf32>
    %74 = vector.shape_cast %73 : vector<5x1x8xf32> to vector<5x8xf32>
    %75 = vector.shape_cast %74 : vector<5x8xf32> to vector<5x8x1xf32>
    %76 = vector.extract_strided_slice %1 {offsets = [0, 4, 0], sizes = [5, 1, 32], strides = [1, 1, 1]} : vector<5x8x32xf32> to vector<5x1x32xf32>
    %77 = vector.shape_cast %76 : vector<5x1x32xf32> to vector<5x32xf32>
    %78 = vector.shape_cast %77 : vector<5x32xf32> to vector<5x1x32xf32>
    %79 = vector.broadcast %75 : vector<5x8x1xf32> to vector<5x8x32xf32>
    %80 = vector.broadcast %78 : vector<5x1x32xf32> to vector<5x8x32xf32>
    %81 = arith.mulf %79, %80 : vector<5x8x32xf32>
    %82 = arith.addf %67, %81 : vector<5x8x32xf32>
    %83 = vector.extract_strided_slice %14 {offsets = [0, 4, 0, 0], sizes = [5, 1, 8, 16], strides = [1, 1, 1, 1]} : vector<5x8x8x16xf32> to vector<5x1x8x16xf32>
    %84 = vector.shape_cast %83 : vector<5x1x8x16xf32> to vector<5x8x16xf32>
    %85 = vector.broadcast %75 : vector<5x8x1xf32> to vector<5x8x16xf32>
    %86 = arith.mulf %85, %84 : vector<5x8x16xf32>
    %87 = arith.addf %72, %86 : vector<5x8x16xf32>
    %88 = vector.extract_strided_slice %3 {offsets = [0, 5, 0], sizes = [5, 1, 8], strides = [1, 1, 1]} : vector<5x8x8xf32> to vector<5x1x8xf32>
    %89 = vector.shape_cast %88 : vector<5x1x8xf32> to vector<5x8xf32>
    %90 = vector.shape_cast %89 : vector<5x8xf32> to vector<5x8x1xf32>
    %91 = vector.extract_strided_slice %1 {offsets = [0, 5, 0], sizes = [5, 1, 32], strides = [1, 1, 1]} : vector<5x8x32xf32> to vector<5x1x32xf32>
    %92 = vector.shape_cast %91 : vector<5x1x32xf32> to vector<5x32xf32>
    %93 = vector.shape_cast %92 : vector<5x32xf32> to vector<5x1x32xf32>
    %94 = vector.broadcast %90 : vector<5x8x1xf32> to vector<5x8x32xf32>
    %95 = vector.broadcast %93 : vector<5x1x32xf32> to vector<5x8x32xf32>
    %96 = arith.mulf %94, %95 : vector<5x8x32xf32>
    %97 = arith.addf %82, %96 : vector<5x8x32xf32>
    %98 = vector.extract_strided_slice %14 {offsets = [0, 5, 0, 0], sizes = [5, 1, 8, 16], strides = [1, 1, 1, 1]} : vector<5x8x8x16xf32> to vector<5x1x8x16xf32>
    %99 = vector.shape_cast %98 : vector<5x1x8x16xf32> to vector<5x8x16xf32>
    %100 = vector.broadcast %90 : vector<5x8x1xf32> to vector<5x8x16xf32>
    %101 = arith.mulf %100, %99 : vector<5x8x16xf32>
    %102 = arith.addf %87, %101 : vector<5x8x16xf32>
    %103 = vector.extract_strided_slice %3 {offsets = [0, 6, 0], sizes = [5, 1, 8], strides = [1, 1, 1]} : vector<5x8x8xf32> to vector<5x1x8xf32>
    %104 = vector.shape_cast %103 : vector<5x1x8xf32> to vector<5x8xf32>
    %105 = vector.shape_cast %104 : vector<5x8xf32> to vector<5x8x1xf32>
    %106 = vector.extract_strided_slice %1 {offsets = [0, 6, 0], sizes = [5, 1, 32], strides = [1, 1, 1]} : vector<5x8x32xf32> to vector<5x1x32xf32>
    %107 = vector.shape_cast %106 : vector<5x1x32xf32> to vector<5x32xf32>
    %108 = vector.shape_cast %107 : vector<5x32xf32> to vector<5x1x32xf32>
    %109 = vector.broadcast %105 : vector<5x8x1xf32> to vector<5x8x32xf32>
    %110 = vector.broadcast %108 : vector<5x1x32xf32> to vector<5x8x32xf32>
    %111 = arith.mulf %109, %110 : vector<5x8x32xf32>
    %112 = arith.addf %97, %111 : vector<5x8x32xf32>
    %113 = vector.extract_strided_slice %14 {offsets = [0, 6, 0, 0], sizes = [5, 1, 8, 16], strides = [1, 1, 1, 1]} : vector<5x8x8x16xf32> to vector<5x1x8x16xf32>
    %114 = vector.shape_cast %113 : vector<5x1x8x16xf32> to vector<5x8x16xf32>
    %115 = vector.broadcast %105 : vector<5x8x1xf32> to vector<5x8x16xf32>
    %116 = arith.mulf %115, %114 : vector<5x8x16xf32>
    %117 = arith.addf %102, %116 : vector<5x8x16xf32>
    %118 = vector.extract_strided_slice %3 {offsets = [0, 7, 0], sizes = [5, 1, 8], strides = [1, 1, 1]} : vector<5x8x8xf32> to vector<5x1x8xf32>
    %119 = vector.shape_cast %118 : vector<5x1x8xf32> to vector<5x8xf32>
    %120 = vector.shape_cast %119 : vector<5x8xf32> to vector<5x8x1xf32>
    %121 = vector.extract_strided_slice %1 {offsets = [0, 7, 0], sizes = [5, 1, 32], strides = [1, 1, 1]} : vector<5x8x32xf32> to vector<5x1x32xf32>
    %122 = vector.shape_cast %121 : vector<5x1x32xf32> to vector<5x32xf32>
    %123 = vector.shape_cast %122 : vector<5x32xf32> to vector<5x1x32xf32>
    %124 = vector.broadcast %120 : vector<5x8x1xf32> to vector<5x8x32xf32>
    %125 = vector.broadcast %123 : vector<5x1x32xf32> to vector<5x8x32xf32>
    %126 = arith.mulf %124, %125 : vector<5x8x32xf32>
    %127 = arith.addf %112, %126 : vector<5x8x32xf32>
    %128 = vector.extract_strided_slice %14 {offsets = [0, 7, 0, 0], sizes = [5, 1, 8, 16], strides = [1, 1, 1, 1]} : vector<5x8x8x16xf32> to vector<5x1x8x16xf32>
    %129 = vector.shape_cast %128 : vector<5x1x8x16xf32> to vector<5x8x16xf32>
    %130 = vector.broadcast %120 : vector<5x8x1xf32> to vector<5x8x16xf32>
    %131 = arith.mulf %130, %129 : vector<5x8x16xf32>
    %132 = arith.addf %117, %131 : vector<5x8x16xf32>
    %133 = vector.shape_cast %127 : vector<5x8x32xf32> to vector<40x32xf32>
    %134 = vector.shape_cast %132 : vector<5x8x16xf32> to vector<40x16xf32>
    %c0_14 = arith.constant 0 : index
    %c0_15 = arith.constant 0 : index
    %135 = vector.load %arg7[%c0_14, %c0_15] : memref<32x32xf32, #tpu.memory_space<vmem>>, vector<32x32xf32>
    %cst_16 = arith.constant dense<0.000000e+00> : vector<40x32xf32>
    %136 = tpu.matmul %133, %135, %cst_16 {dimension_numbers = #tpu.dot_dimension_numbers<[1], [0], [0], [1], [0, 0, 1, 1], [], []>} : vector<40x32xf32>, vector<32x32xf32>, vector<40x32xf32> -> vector<40x32xf32>
    %c0_17 = arith.constant 0 : index
    %c0_18 = arith.constant 0 : index
    %137 = vector.load %arg8[%c0_17, %c0_18] : memref<16x32xf32, #tpu.memory_space<vmem>>, vector<16x32xf32>
    %cst_19 = arith.constant dense<0.000000e+00> : vector<40x32xf32>
    %138 = tpu.matmul %134, %137, %cst_19 {dimension_numbers = #tpu.dot_dimension_numbers<[1], [0], [0], [1], [0, 0, 1, 1], [], []>} : vector<40x16xf32>, vector<16x32xf32>, vector<40x32xf32> -> vector<40x32xf32>
    %139 = arith.addf %136, %138 : vector<40x32xf32>
    %c0_20 = arith.constant 0 : index
    %c0_21 = arith.constant 0 : index
    %140 = vector.load %arg9[%c0_20, %c0_21] : memref<1x32xf32, #tpu.memory_space<vmem>>, vector<1x32xf32>
    %141 = vector.broadcast %140 : vector<1x32xf32> to vector<40x32xf32>
    %142 = arith.addf %139, %141 : vector<40x32xf32>
    %cst_22 = arith.constant 0.000000e+00 : f32
    %143 = vector.broadcast %cst_22 : f32 to vector<40x32xf32>
    %144 = arith.maximumf %142, %143 : vector<40x32xf32>
    %c0_23 = arith.constant 0 : index
    %145 = memref.load %arg1[%c0_23] : memref<1xf32, #tpu.memory_space<smem>>
    %cst_24 = arith.constant 1.000000e+00 : f32
    %146 = arith.addf %cst_24, %145 : f32
    %147 = vector.shape_cast %1 : vector<5x8x32xf32> to vector<40x32xf32>
    %148 = vector.broadcast %146 : f32 to vector<40x32xf32>
    %149 = arith.mulf %148, %147 : vector<40x32xf32>
    %150 = arith.addf %149, %144 : vector<40x32xf32>
    %c0_25 = arith.constant 0 : index
    %c0_26 = arith.constant 0 : index
    %151 = vector.load %arg10[%c0_25, %c0_26] : memref<32x32xf32, #tpu.memory_space<vmem>>, vector<32x32xf32>
    %cst_27 = arith.constant dense<0.000000e+00> : vector<40x32xf32>
    %152 = tpu.matmul %150, %151, %cst_27 {dimension_numbers = #tpu.dot_dimension_numbers<[1], [0], [0], [1], [0, 0, 1, 1], [], []>} : vector<40x32xf32>, vector<32x32xf32>, vector<40x32xf32> -> vector<40x32xf32>
    %c0_28 = arith.constant 0 : index
    %c0_29 = arith.constant 0 : index
    %153 = vector.load %arg11[%c0_28, %c0_29] : memref<1x32xf32, #tpu.memory_space<vmem>>, vector<1x32xf32>
    %154 = vector.broadcast %153 : vector<1x32xf32> to vector<40x32xf32>
    %155 = arith.addf %152, %154 : vector<40x32xf32>
    %cst_30 = arith.constant 0.000000e+00 : f32
    %156 = vector.broadcast %cst_30 : f32 to vector<40x32xf32>
    %157 = arith.maximumf %155, %156 : vector<40x32xf32>
    %c0_31 = arith.constant 0 : index
    %c0_32 = arith.constant 0 : index
    %158 = vector.load %arg12[%c0_31, %c0_32] : memref<32x32xf32, #tpu.memory_space<vmem>>, vector<32x32xf32>
    %cst_33 = arith.constant dense<0.000000e+00> : vector<40x32xf32>
    %159 = tpu.matmul %157, %158, %cst_33 {dimension_numbers = #tpu.dot_dimension_numbers<[1], [0], [0], [1], [0, 0, 1, 1], [], []>} : vector<40x32xf32>, vector<32x32xf32>, vector<40x32xf32> -> vector<40x32xf32>
    %c0_34 = arith.constant 0 : index
    %c0_35 = arith.constant 0 : index
    %160 = vector.load %arg13[%c0_34, %c0_35] : memref<1x32xf32, #tpu.memory_space<vmem>>, vector<1x32xf32>
    %161 = vector.broadcast %160 : vector<1x32xf32> to vector<40x32xf32>
    %162 = arith.addf %159, %161 : vector<40x32xf32>
    %cst_36 = arith.constant 0.000000e+00 : f32
    %163 = vector.broadcast %cst_36 : f32 to vector<40x32xf32>
    %164 = arith.maximumf %162, %163 : vector<40x32xf32>
    %165 = vector.shape_cast %164 : vector<40x32xf32> to vector<5x8x32xf32>
    %c0_37 = arith.constant 0 : index
    %c0_38 = arith.constant 0 : index
    %c0_39 = arith.constant 0 : index
    %166 = vector.load %arg14[%c0_37, %c0_38, %c0_39] : memref<5x8x32xf32, #tpu.memory_space<vmem>>, vector<5x8x32xf32>
    tpu.vector_store %arg14[%c0_37, %c0_38, %c0_39], %165 {strides = array<i32>} : memref<5x8x32xf32, #tpu.memory_space<vmem>>, vector<5x8x32xf32>,
    return
  }
  func.func @transform_0(%arg0: i32) -> i32 {
    %c0_i32 = arith.constant 0 : i32
    %c0_i32_0 = arith.constant 0 : i32
    return %c0_i32 : i32
  }
  func.func @transform_1(%arg0: i32) -> (i32, i32, i32) {
    %c0_i32 = arith.constant 0 : i32
    %c0_i32_0 = arith.constant 0 : i32
    %c0_i32_1 = arith.constant 0 : i32
    return %arg0, %c0_i32, %c0_i32_0 : i32, i32, i32
  }
  func.func @transform_2(%arg0: i32) -> (i32, i32, i32, i32) {
    %c0_i32 = arith.constant 0 : i32
    %c0_i32_0 = arith.constant 0 : i32
    %c0_i32_1 = arith.constant 0 : i32
    %c0_i32_2 = arith.constant 0 : i32
    return %arg0, %c0_i32, %c0_i32_0, %c0_i32_1 : i32, i32, i32, i32
  }
  func.func @transform_3(%arg0: i32) -> (i32, i32, i32) {
    %c0_i32 = arith.constant 0 : i32
    %c0_i32_0 = arith.constant 0 : i32
    %c0_i32_1 = arith.constant 0 : i32
    return %arg0, %c0_i32, %c0_i32_0 : i32, i32, i32
  }
  func.func @transform_4(%arg0: i32) -> (i32, i32) {
    %c0_i32 = arith.constant 0 : i32
    %c0_i32_0 = arith.constant 0 : i32
    %c0_i32_1 = arith.constant 0 : i32
    return %c0_i32, %c0_i32_0 : i32, i32
  }
  func.func @transform_5(%arg0: i32) -> (i32, i32) {
    %c0_i32 = arith.constant 0 : i32
    %c0_i32_0 = arith.constant 0 : i32
    %c0_i32_1 = arith.constant 0 : i32
    return %c0_i32, %c0_i32_0 : i32, i32
  }
  func.func @transform_6(%arg0: i32) -> (i32, i32) {
    %c0_i32 = arith.constant 0 : i32
    %c0_i32_0 = arith.constant 0 : i32
    %c0_i32_1 = arith.constant 0 : i32
    return %c0_i32, %c0_i32_0 : i32, i32
  }
  func.func @transform_7(%arg0: i32) -> (i32, i32) {
    %c0_i32 = arith.constant 0 : i32
    %c0_i32_0 = arith.constant 0 : i32
    %c0_i32_1 = arith.constant 0 : i32
    return %c0_i32, %c0_i32_0 : i32, i32
  }
  func.func @transform_8(%arg0: i32) -> (i32, i32) {
    %c0_i32 = arith.constant 0 : i32
    %c0_i32_0 = arith.constant 0 : i32
    %c0_i32_1 = arith.constant 0 : i32
    return %c0_i32, %c0_i32_0 : i32, i32
  }
  func.func @transform_9(%arg0: i32) -> (i32, i32) {
    %c0_i32 = arith.constant 0 : i32
    %c0_i32_0 = arith.constant 0 : i32
    %c0_i32_1 = arith.constant 0 : i32
    return %c0_i32, %c0_i32_0 : i32, i32
  }
  func.func @transform_10(%arg0: i32) -> (i32, i32) {
    %c0_i32 = arith.constant 0 : i32
    %c0_i32_0 = arith.constant 0 : i32
    %c0_i32_1 = arith.constant 0 : i32
    return %c0_i32, %c0_i32_0 : i32, i32
  }
  func.func @transform_11(%arg0: i32) -> (i32, i32) {
    %c0_i32 = arith.constant 0 : i32
    %c0_i32_0 = arith.constant 0 : i32
    %c0_i32_1 = arith.constant 0 : i32
    return %c0_i32, %c0_i32_0 : i32, i32
  }
  func.func @transform_12(%arg0: i32) -> (i32, i32) {
    %c0_i32 = arith.constant 0 : i32
    %c0_i32_0 = arith.constant 0 : i32
    %c0_i32_1 = arith.constant 0 : i32
    return %c0_i32, %c0_i32_0 : i32, i32
  }
  func.func @transform_13(%arg0: i32) -> (i32, i32, i32) {
    %c0_i32 = arith.constant 0 : i32
    %c0_i32_0 = arith.constant 0 : i32
    %c0_i32_1 = arith.constant 0 : i32
    return %arg0, %c0_i32, %c0_i32_0 : i32, i32, i32
  }
}

</mosaic_0001>

<llo_original>
// kernel: tpu_custom_call.1
$region0: #{tpu_custom_call.1}
  #allocation0 [shape = 'u32[]', space=smem, size = 0x4, offset = 0x4, fixed_abs, tag = 'smem constant byte address 0x4 - core index']
  #allocation1 [shape = 'u32[144,128]{1,0:T(1,128)}', space=vmem, size = 0x12000, scoped, tag = 'internal scratch']
  #allocation2 [shape = 'f32[1]{0:T(128)S(6)}', space=smem, size = 0x200, scoped, tag = 'scoped memory for tpu_custom_call.1']
  %s0 = inlined_call_operand.<no memory space> [shape: f32[1], index: 0, kind: input, shape index: {}]
  %s1 = inlined_call_operand.vmem [shape: bf16[10,8,32], index: 1, kind: input, shape index: {}]
  %s2 = inlined_call_operand.hbm [shape: bf16[10,8,8,16], index: 2, kind: input, shape index: {}]
  %s3 = inlined_call_operand.vmem [shape: bf16[10,8,8], index: 3, kind: input, shape index: {}]
  %s4 = inlined_call_operand.hbm [shape: f32[16,16], index: 4, kind: input, shape index: {}]
  %s5 = inlined_call_operand.vmem [shape: f32[1,16], index: 5, kind: input, shape index: {}]
  %s6 = inlined_call_operand.vmem [shape: f32[32,32], index: 6, kind: input, shape index: {}]
  %s7 = inlined_call_operand.hbm [shape: f32[16,32], index: 7, kind: input, shape index: {}]
  %s8 = inlined_call_operand.vmem [shape: f32[1,32], index: 8, kind: input, shape index: {}]
  %s9 = inlined_call_operand.hbm [shape: f32[32,32], index: 9, kind: input, shape index: {}]
  %s10 = inlined_call_operand.vmem [shape: f32[1,32], index: 10, kind: input, shape index: {}]
  %s11 = inlined_call_operand.hbm [shape: f32[32,32], index: 11, kind: input, shape index: {}]
  %s12 = inlined_call_operand.vmem [shape: f32[1,32], index: 12, kind: input, shape index: {}]
  %s13 = inlined_call_operand.hbm [shape: f32[10,8,32], index: 13, kind: output, shape index: {}]
  %s14 = sld [smem:[#allocation0]]
  $region105: #{tpu_custom_call.1} parent=0
    _
  %s16 = ssub.s32 1, %s14
  %s17 = scalar_select 0, %s16, %s14
  %18 = sst [smem:[#allocation2]] %s0
  $region1: #{tpu_custom_call.1} parent=0
    #allocation3 [shape = 'u8[163840]{0}', space=vmem, size = 0x28000, scoped, tag = 'input window, operand 2']
    #allocation4 [shape = 's32[2]{0}', space=sflag, size = 0x8, scoped, tag = 'scoped memory for tpu_custom_call.1']
    #allocation5 [shape = 's32[2]{0}', space=sflag, size = 0x8, scoped, tag = 'scoped memory for tpu_custom_call.1']
    #allocation6 [shape = 'u8[8192]{0}', space=vmem, size = 0x2000, scoped, tag = 'input window, operand 4, single buffered']
    #allocation7 [shape = 's32[1]{0}', space=sflag, size = 0x4, scoped, tag = 'scoped memory for tpu_custom_call.1']
    #allocation8 [shape = 'u8[8192]{0}', space=vmem, size = 0x2000, scoped, tag = 'input window, operand 7, single buffered']
    #allocation9 [shape = 'u8[16384]{0}', space=vmem, size = 0x4000, scoped, tag = 'input window, operand 9, single buffered']
    #allocation10 [shape = 's32[1]{0}', space=sflag, size = 0x4, scoped, tag = 'scoped memory for tpu_custom_call.1']
    #allocation11 [shape = 'u8[16384]{0}', space=vmem, size = 0x4000, scoped, tag = 'input window, operand 11, single buffered']
    #allocation12 [shape = 'u8[40960]{0}', space=vmem, size = 0xa000, scoped, tag = 'output window, operand 0']
    %19 = vsyncpa [#allocation4], 0
    %s20 = scalar_lea.sflag [#allocation4], 1
    %21 = vsyncpa %s20, 0
    %22 = vsyncpa [#allocation7], 0
    %23 = vsyncpa [#allocation10], 0
    %24 = vsyncpa [#allocation5], 0
    %s25 = scalar_lea.sflag [#allocation5], 1
    %26 = vsyncpa %s25, 0
    loop: start=0, step=1, limit=4
    $region2: #{tpu_custom_call.1} parent=1 // loop_pre_header
      _
    $region3: #{tpu_custom_call.1} parent=1 // loop_header
      %s28 = sphi 0, %s32
      %p29 = scmp.ge.s32.totalorder %s28, 4
      %s36 = sphi 0, %s36
      %s38 = sphi 0, %s36
      %s39 = sphi 0, %s38
      %s53 = sphi 0, %s39
      %s59 = sphi 0, %s61
      %s62 = sphi 0, %s59
      %s63 = sphi 0, %s62
      %s79 = sphi 0, %s63
      %s85 = sphi 0, %s87
      %s88 = sphi 0, %s85
      %s89 = sphi 0, %s88
      %s105 = sphi 0, %s89
      %s111 = sphi 0, %s113
      %s114 = sphi 0, %s111
      %s115 = sphi 0, %s114
      %s131 = sphi 0, %s115
      %s135 = sphi 0, %s135
      %s137 = sphi 0, %s135
      %s138 = sphi 0, %s137
      %s152 = sphi 0, %s138
      %s156 = sphi 0, %s156
      %s158 = sphi 0, %s156
      %s159 = sphi 0, %s158
      %s173 = sphi 0, %s159
      %s177 = sphi 0, %s177
      %s179 = sphi 0, %s177
      %s180 = sphi 0, %s179
      %s194 = sphi 0, %s180
      %s198 = sphi 0, %s198
      %s200 = sphi 0, %s198
      %s201 = sphi 0, %s200
      %s215 = sphi 0, %s201
      %s219 = sphi 0, %s219
      %s221 = sphi 0, %s219
      %s222 = sphi 0, %s221
      %s236 = sphi 0, %s222
      %s240 = sphi 0, %s240
      %s242 = sphi 0, %s240
      %s243 = sphi 0, %s242
      %s257 = sphi 0, %s243
      %s261 = sphi 0, %s261
      %s263 = sphi 0, %s261
      %s264 = sphi 0, %s263
      %s278 = sphi 0, %s264
      %s282 = sphi 0, %s282
      %s284 = sphi 0, %s282
      %s285 = sphi 0, %s284
      %s299 = sphi 0, %s285
      %s303 = sphi 0, %s303
      %s305 = sphi 0, %s303
      %s306 = sphi 0, %s305
      %s320 = sphi 0, %s306
      %s326 = sphi 0, %s328
      %s329 = sphi 0, %s326
      %s330 = sphi 0, %s329
      %s346 = sphi 0, %s330
    $region4: #{tpu_custom_call.1} parent=1 // loop_header_branch
      %31 = sbr.rel (%p29) target = $region8
    $region5: #{tpu_custom_call.1} parent=1 // loop_body
      %s33 = ssub.s32 %s28, 1
      %s34 = ssub.s32 %s28, 2
      %s35 = sadd.s32 %s28, 1
      %s37 = sadd.s32 %s36, 1
      %p40 = scmp.eq.s32.totalorder %s28, 1
      %p41 = scmp.ne.s32.totalorder %s36, %s38
      %p42 = scmp.eq.s32.totalorder %s28, 0
      %p43 = por %p41, %p42
      %p44 = scmp.ne.s32.totalorder %s36, %s38
      %p45 = scmp.eq.s32.totalorder %s33, 1
      %p46 = por %p44, %p45
      %p47 = scmp.ne.s32.totalorder %s38, %s39
      %p48 = scmp.eq.s32.totalorder %s33, 0
      %p49 = por %p47, %p48
      %p50 = scmp.ne.s32.totalorder %s38, %s39
      %p51 = scmp.eq.s32.totalorder %s34, 1
      %p52 = por %p50, %p51
      %p54 = scmp.ne.s32.totalorder %s39, %s53
      %p55 = scmp.eq.s32.totalorder %s34, 0
      %p56 = por %p54, %p55
      %s57 = ssub.s32 %s28, %s35
      %p58 = scmp.eq.s32.totalorder %s57, 0
      %s60 = sadd.s32 %s59, 1
      %s61 = scalar_select %p58, %s59, %s60
      %p64 = pneg %p58
      %p65 = scmp.eq.s32.totalorder %s28, 1
      %p66 = por %p64, %p65
      %p67 = scmp.ne.s32.totalorder %s59, %s62
      %p68 = scmp.eq.s32.totalorder %s28, 0
      %p69 = por %p67, %p68
      %p70 = scmp.ne.s32.totalorder %s59, %s62
      %p71 = scmp.eq.s32.totalorder %s33, 1
      %p72 = por %p70, %p71
      %p73 = scmp.ne.s32.totalorder %s62, %s63
      %p74 = scmp.eq.s32.totalorder %s33, 0
      %p75 = por %p73, %p74
      %p76 = scmp.ne.s32.totalorder %s62, %s63
      %p77 = scmp.eq.s32.totalorder %s34, 1
      %p78 = por %p76, %p77
      %p80 = scmp.ne.s32.totalorder %s63, %s79
      %p81 = scmp.eq.s32.totalorder %s34, 0
      %p82 = por %p80, %p81
      %s83 = ssub.s32 %s28, %s35
      %p84 = scmp.eq.s32.totalorder %s83, 0
      %s86 = sadd.s32 %s85, 1
      %s87 = scalar_select %p84, %s85, %s86
      %p90 = pneg %p84
      %p91 = scmp.eq.s32.totalorder %s28, 1
      %p92 = por %p90, %p91
      %p93 = scmp.ne.s32.totalorder %s85, %s88
      %p94 = scmp.eq.s32.totalorder %s28, 0
      %p95 = por %p93, %p94
      %p96 = scmp.ne.s32.totalorder %s85, %s88
      %p97 = scmp.eq.s32.totalorder %s33, 1
      %p98 = por %p96, %p97
      %p99 = scmp.ne.s32.totalorder %s88, %s89
      %p100 = scmp.eq.s32.totalorder %s33, 0
      %p101 = por %p99, %p100
      %p102 = scmp.ne.s32.totalorder %s88, %s89
      %p103 = scmp.eq.s32.totalorder %s34, 1
      %p104 = por %p102, %p103
      %p106 = scmp.ne.s32.totalorder %s89, %s105
      %p107 = scmp.eq.s32.totalorder %s34, 0
      %p108 = por %p106, %p107
      %s109 = ssub.s32 %s28, %s35
      %p110 = scmp.eq.s32.totalorder %s109, 0
      %s112 = sadd.s32 %s111, 1
      %s113 = scalar_select %p110, %s111, %s112
      %p116 = pneg %p110
      %p117 = scmp.eq.s32.totalorder %s28, 1
      %p118 = por %p116, %p117
      %p119 = scmp.ne.s32.totalorder %s111, %s114
      %p120 = scmp.eq.s32.totalorder %s28, 0
      %p121 = por %p119, %p120
      %p122 = scmp.ne.s32.totalorder %s111, %s114
      %p123 = scmp.eq.s32.totalorder %s33, 1
      %p124 = por %p122, %p123
      %p125 = scmp.ne.s32.totalorder %s114, %s115
      %p126 = scmp.eq.s32.totalorder %s33, 0
      %p127 = por %p125, %p126
      %p128 = scmp.ne.s32.totalorder %s114, %s115
      %p129 = scmp.eq.s32.totalorder %s34, 1
      %p130 = por %p128, %p129
      %p132 = scmp.ne.s32.totalorder %s115, %s131
      %p133 = scmp.eq.s32.totalorder %s34, 0
      %p134 = por %p132, %p133
      %s136 = sadd.s32 %s135, 1
      %p139 = scmp.eq.s32.totalorder %s28, 1
      %p140 = scmp.ne.s32.totalorder %s135, %s137
      %p141 = scmp.eq.s32.totalorder %s28, 0
      %p142 = por %p140, %p141
      %p143 = scmp.ne.s32.totalorder %s135, %s137
      %p144 = scmp.eq.s32.totalorder %s33, 1
      %p145 = por %p143, %p144
      %p146 = scmp.ne.s32.totalorder %s137, %s138
      %p147 = scmp.eq.s32.totalorder %s33, 0
      %p148 = por %p146, %p147
      %p149 = scmp.ne.s32.totalorder %s137, %s138
      %p150 = scmp.eq.s32.totalorder %s34, 1
      %p151 = por %p149, %p150
      %p153 = scmp.ne.s32.totalorder %s138, %s152
      %p154 = scmp.eq.s32.totalorder %s34, 0
      %p155 = por %p153, %p154
      %s157 = sadd.s32 %s156, 1
      %p160 = scmp.eq.s32.totalorder %s28, 1
      %p161 = scmp.ne.s32.totalorder %s156, %s158
      %p162 = scmp.eq.s32.totalorder %s28, 0
      %p163 = por %p161, %p162
      %p164 = scmp.ne.s32.totalorder %s156, %s158
      %p165 = scmp.eq.s32.totalorder %s33, 1
      %p166 = por %p164, %p165
      %p167 = scmp.ne.s32.totalorder %s158, %s159
      %p168 = scmp.eq.s32.totalorder %s33, 0
      %p169 = por %p167, %p168
      %p170 = scmp.ne.s32.totalorder %s158, %s159
      %p171 = scmp.eq.s32.totalorder %s34, 1
      %p172 = por %p170, %p171
      %p174 = scmp.ne.s32.totalorder %s159, %s173
      %p175 = scmp.eq.s32.totalorder %s34, 0
      %p176 = por %p174, %p175
      %s178 = sadd.s32 %s177, 1
      %p181 = scmp.eq.s32.totalorder %s28, 1
      %p182 = scmp.ne.s32.totalorder %s177, %s179
      %p183 = scmp.eq.s32.totalorder %s28, 0
      %p184 = por %p182, %p183
      %p185 = scmp.ne.s32.totalorder %s177, %s179
      %p186 = scmp.eq.s32.totalorder %s33, 1
      %p187 = por %p185, %p186
      %p188 = scmp.ne.s32.totalorder %s179, %s180
      %p189 = scmp.eq.s32.totalorder %s33, 0
      %p190 = por %p188, %p189
      %p191 = scmp.ne.s32.totalorder %s179, %s180
      %p192 = scmp.eq.s32.totalorder %s34, 1
      %p193 = por %p191, %p192
      %p195 = scmp.ne.s32.totalorder %s180, %s194
      %p196 = scmp.eq.s32.totalorder %s34, 0
      %p197 = por %p195, %p196
      %s199 = sadd.s32 %s198, 1
      %p202 = scmp.eq.s32.totalorder %s28, 1
      %p203 = scmp.ne.s32.totalorder %s198, %s200
      %p204 = scmp.eq.s32.totalorder %s28, 0
      %p205 = por %p203, %p204
      %p206 = scmp.ne.s32.totalorder %s198, %s200
      %p207 = scmp.eq.s32.totalorder %s33, 1
      %p208 = por %p206, %p207
      %p209 = scmp.ne.s32.totalorder %s200, %s201
      %p210 = scmp.eq.s32.totalorder %s33, 0
      %p211 = por %p209, %p210
      %p212 = scmp.ne.s32.totalorder %s200, %s201
      %p213 = scmp.eq.s32.totalorder %s34, 1
      %p214 = por %p212, %p213
      %p216 = scmp.ne.s32.totalorder %s201, %s215
      %p217 = scmp.eq.s32.totalorder %s34, 0
      %p218 = por %p216, %p217
      %s220 = sadd.s32 %s219, 1
      %p223 = scmp.eq.s32.totalorder %s28, 1
      %p224 = scmp.ne.s32.totalorder %s219, %s221
      %p225 = scmp.eq.s32.totalorder %s28, 0
      %p226 = por %p224, %p225
      %p227 = scmp.ne.s32.totalorder %s219, %s221
      %p228 = scmp.eq.s32.totalorder %s33, 1
      %p229 = por %p227, %p228
      %p230 = scmp.ne.s32.totalorder %s221, %s222
      %p231 = scmp.eq.s32.totalorder %s33, 0
      %p232 = por %p230, %p231
      %p233 = scmp.ne.s32.totalorder %s221, %s222
      %p234 = scmp.eq.s32.totalorder %s34, 1
      %p235 = por %p233, %p234
      %p237 = scmp.ne.s32.totalorder %s222, %s236
      %p238 = scmp.eq.s32.totalorder %s34, 0
      %p239 = por %p237, %p238
      %s241 = sadd.s32 %s240, 1
      %p244 = scmp.eq.s32.totalorder %s28, 1
      %p245 = scmp.ne.s32.totalorder %s240, %s242
      %p246 = scmp.eq.s32.totalorder %s28, 0
      %p247 = por %p245, %p246
      %p248 = scmp.ne.s32.totalorder %s240, %s242
      %p249 = scmp.eq.s32.totalorder %s33, 1
      %p250 = por %p248, %p249
      %p251 = scmp.ne.s32.totalorder %s242, %s243
      %p252 = scmp.eq.s32.totalorder %s33, 0
      %p253 = por %p251, %p252
      %p254 = scmp.ne.s32.totalorder %s242, %s243
      %p255 = scmp.eq.s32.totalorder %s34, 1
      %p256 = por %p254, %p255
      %p258 = scmp.ne.s32.totalorder %s243, %s257
      %p259 = scmp.eq.s32.totalorder %s34, 0
      %p260 = por %p258, %p259
      %s262 = sadd.s32 %s261, 1
      %p265 = scmp.eq.s32.totalorder %s28, 1
      %p266 = scmp.ne.s32.totalorder %s261, %s263
      %p267 = scmp.eq.s32.totalorder %s28, 0
      %p268 = por %p266, %p267
      %p269 = scmp.ne.s32.totalorder %s261, %s263
      %p270 = scmp.eq.s32.totalorder %s33, 1
      %p271 = por %p269, %p270
      %p272 = scmp.ne.s32.totalorder %s263, %s264
      %p273 = scmp.eq.s32.totalorder %s33, 0
      %p274 = por %p272, %p273
      %p275 = scmp.ne.s32.totalorder %s263, %s264
      %p276 = scmp.eq.s32.totalorder %s34, 1
      %p277 = por %p275, %p276
      %p279 = scmp.ne.s32.totalorder %s264, %s278
      %p280 = scmp.eq.s32.totalorder %s34, 0
      %p281 = por %p279, %p280
      %s283 = sadd.s32 %s282, 1
      %p286 = scmp.eq.s32.totalorder %s28, 1
      %p287 = scmp.ne.s32.totalorder %s282, %s284
      %p288 = scmp.eq.s32.totalorder %s28, 0
      %p289 = por %p287, %p288
      %p290 = scmp.ne.s32.totalorder %s282, %s284
      %p291 = scmp.eq.s32.totalorder %s33, 1
      %p292 = por %p290, %p291
      %p293 = scmp.ne.s32.totalorder %s284, %s285
      %p294 = scmp.eq.s32.totalorder %s33, 0
      %p295 = por %p293, %p294
      %p296 = scmp.ne.s32.totalorder %s284, %s285
      %p297 = scmp.eq.s32.totalorder %s34, 1
      %p298 = por %p296, %p297
      %p300 = scmp.ne.s32.totalorder %s285, %s299
      %p301 = scmp.eq.s32.totalorder %s34, 0
      %p302 = por %p300, %p301
      %s304 = sadd.s32 %s303, 1
      %p307 = scmp.eq.s32.totalorder %s28, 1
      %p308 = scmp.ne.s32.totalorder %s303, %s305
      %p309 = scmp.eq.s32.totalorder %s28, 0
      %p310 = por %p308, %p309
      %p311 = scmp.ne.s32.totalorder %s303, %s305
      %p312 = scmp.eq.s32.totalorder %s33, 1
      %p313 = por %p311, %p312
      %p314 = scmp.ne.s32.totalorder %s305, %s306
      %p315 = scmp.eq.s32.totalorder %s33, 0
      %p316 = por %p314, %p315
      %p317 = scmp.ne.s32.totalorder %s305, %s306
      %p318 = scmp.eq.s32.totalorder %s34, 1
      %p319 = por %p317, %p318
      %p321 = scmp.ne.s32.totalorder %s306, %s320
      %p322 = scmp.eq.s32.totalorder %s34, 0
      %p323 = por %p321, %p322
      %s324 = ssub.s32 %s28, %s35
      %p325 = scmp.eq.s32.totalorder %s324, 0
      %s327 = sadd.s32 %s326, 1
      %s328 = scalar_select %p325, %s326, %s327
      %p331 = pneg %p325
      %p332 = scmp.eq.s32.totalorder %s28, 1
      %p333 = por %p331, %p332
      %p334 = scmp.ne.s32.totalorder %s326, %s329
      %p335 = scmp.eq.s32.totalorder %s28, 0
      %p336 = por %p334, %p335
      %p337 = scmp.ne.s32.totalorder %s326, %s329
      %p338 = scmp.eq.s32.totalorder %s33, 1
      %p339 = por %p337, %p338
      %p340 = scmp.ne.s32.totalorder %s329, %s330
      %p341 = scmp.eq.s32.totalorder %s33, 0
      %p342 = por %p340, %p341
      %p343 = scmp.ne.s32.totalorder %s329, %s330
      %p344 = scmp.eq.s32.totalorder %s34, 1
      %p345 = por %p343, %p344
      %p347 = scmp.ne.s32.totalorder %s330, %s346
      %p348 = scmp.eq.s32.totalorder %s34, 0
      %p349 = por %p347, %p348
      %p350 = scmp.le.s32.totalorder 1, %s28
      %p351 = scmp.lt.s32.totalorder %s28, 3
      %p352 = pnand %p350, %p351
      %p353 = pneg %p352
      // Predicated region
      $region9: #{tpu_custom_call.1} parent=5 // pred_check
        _
      $region10: #{tpu_custom_call.1} parent=5 // pred_check_branch
        %355 = sbr.rel (%p352) target = $region12
      $region11: #{tpu_custom_call.1} parent=5 // pred_region
        %s356 = ssub.s32 %s28, 1
        // Predicated region
        $region13: #{tpu_custom_call.1} parent=11 // pred_check
          %p357 = pneg %p49
        $region14: #{tpu_custom_call.1} parent=11 // pred_check_branch
          %359 = sbr.rel (%p357) target = $region16
        $region15: #{tpu_custom_call.1} parent=11 // pred_region
          _
        $region16: #{tpu_custom_call.1} parent=11 // pred_fallthru
          _
        // Predicated region
        $region17: #{tpu_custom_call.1} parent=11 // pred_check
          %p360 = pneg %p148
        $region18: #{tpu_custom_call.1} parent=11 // pred_check_branch
          %362 = sbr.rel (%p360) target = $region20
        $region19: #{tpu_custom_call.1} parent=11 // pred_region
          %s364 = ssub.s32 256, 256
          %365 = vsyncadd [#allocation7], %s364
          %s366 = sshll.u32 [#allocation6], 4
          %s367 = int_to_ptr.vmem [resolvable:$true] %s366
          %372 = dma.hbm_to_vmem [thread:$0]  %s4, 256, %s367, [#allocation7], 128, 128, 8
        $region20: #{tpu_custom_call.1} parent=11 // pred_fallthru
          _
        // Predicated region
        $region21: #{tpu_custom_call.1} parent=11 // pred_check
          %p373 = pneg %p169
        $region22: #{tpu_custom_call.1} parent=11 // pred_check_branch
          %375 = sbr.rel (%p373) target = $region24
        $region23: #{tpu_custom_call.1} parent=11 // pred_region
          _
        $region24: #{tpu_custom_call.1} parent=11 // pred_fallthru
          _
        // Predicated region
        $region25: #{tpu_custom_call.1} parent=11 // pred_check
          %p376 = pneg %p190
        $region26: #{tpu_custom_call.1} parent=11 // pred_check_branch
          %378 = sbr.rel (%p376) target = $region28
        $region27: #{tpu_custom_call.1} parent=11 // pred_region
          _
        $region28: #{tpu_custom_call.1} parent=11 // pred_fallthru
          _
        // Predicated region
        $region29: #{tpu_custom_call.1} parent=11 // pred_check
          %p379 = pneg %p211
        $region30: #{tpu_custom_call.1} parent=11 // pred_check_branch
          %381 = sbr.rel (%p379) target = $region32
        $region31: #{tpu_custom_call.1} parent=11 // pred_region
          %s383 = ssub.s32 256, 256
          %384 = vsyncadd [#allocation7], %s383
          %s385 = sshll.u32 [#allocation8], 4
          %s386 = int_to_ptr.vmem [resolvable:$true] %s385
          %391 = dma.hbm_to_vmem [thread:$0]  %s7, 256, %s386, [#allocation7], 128, 128, 8
        $region32: #{tpu_custom_call.1} parent=11 // pred_fallthru
          _
        // Predicated region
        $region33: #{tpu_custom_call.1} parent=11 // pred_check
          %p392 = pneg %p232
        $region34: #{tpu_custom_call.1} parent=11 // pred_check_branch
          %394 = sbr.rel (%p392) target = $region36
        $region35: #{tpu_custom_call.1} parent=11 // pred_region
          _
        $region36: #{tpu_custom_call.1} parent=11 // pred_fallthru
          _
        // Predicated region
        $region37: #{tpu_custom_call.1} parent=11 // pred_check
          %p395 = pneg %p253
        $region38: #{tpu_custom_call.1} parent=11 // pred_check_branch
          %397 = sbr.rel (%p395) target = $region40
        $region39: #{tpu_custom_call.1} parent=11 // pred_region
          %s399 = ssub.s32 512, 512
          %400 = vsyncadd [#allocation10], %s399
          %s401 = sshll.u32 [#allocation9], 4
          %s402 = int_to_ptr.vmem [resolvable:$true] %s401
          %407 = dma.hbm_to_vmem [thread:$0]  %s9, 512, %s402, [#allocation10], 128, 128, 8
        $region40: #{tpu_custom_call.1} parent=11 // pred_fallthru
          _
        // Predicated region
        $region41: #{tpu_custom_call.1} parent=11 // pred_check
          %p408 = pneg %p274
        $region42: #{tpu_custom_call.1} parent=11 // pred_check_branch
          %410 = sbr.rel (%p408) target = $region44
        $region43: #{tpu_custom_call.1} parent=11 // pred_region
          _
        $region44: #{tpu_custom_call.1} parent=11 // pred_fallthru
          _
        // Predicated region
        $region45: #{tpu_custom_call.1} parent=11 // pred_check
          %p411 = pneg %p295
        $region46: #{tpu_custom_call.1} parent=11 // pred_check_branch
          %413 = sbr.rel (%p411) target = $region48
        $region47: #{tpu_custom_call.1} parent=11 // pred_region
          %s415 = ssub.s32 512, 512
          %416 = vsyncadd [#allocation10], %s415
          %s417 = sshll.u32 [#allocation11], 4
          %s418 = int_to_ptr.vmem [resolvable:$true] %s417
          %423 = dma.hbm_to_vmem [thread:$0]  %s11, 512, %s418, [#allocation10], 128, 128, 8
        $region48: #{tpu_custom_call.1} parent=11 // pred_fallthru
          _
        // Predicated region
        $region49: #{tpu_custom_call.1} parent=11 // pred_check
          %p424 = pneg %p316
        $region50: #{tpu_custom_call.1} parent=11 // pred_check_branch
          %426 = sbr.rel (%p424) target = $region52
        $region51: #{tpu_custom_call.1} parent=11 // pred_region
          _
        $region52: #{tpu_custom_call.1} parent=11 // pred_fallthru
          _
      $region12: #{tpu_custom_call.1} parent=5 // pred_fallthru
        _
      %p427 = scmp.lt.s32.totalorder %s28, 2
      // Predicated region
      $region53: #{tpu_custom_call.1} parent=5 // pred_check
        %p428 = pneg %p427
      $region54: #{tpu_custom_call.1} parent=5 // pred_check_branch
        %430 = sbr.rel (%p428) target = $region56
      $region55: #{tpu_custom_call.1} parent=5 // pred_region
        // Predicated region
        $region57: #{tpu_custom_call.1} parent=55 // pred_check
          %p431 = pneg %p69
        $region58: #{tpu_custom_call.1} parent=55 // pred_check_branch
          %433 = sbr.rel (%p431) target = $region60
        $region59: #{tpu_custom_call.1} parent=55 // pred_region
          %s434 = smul.u32 5, %s28
          %p435 = scmp.lt.s32.totalorder %s434, 9
          %s436 = scalar_select %p435, %s434, 9
          %s437 = smul.addr %s436, 4
          %s438 = scalar_lea.vmem %s1, %s437
          %s439 = smul.u32 5, %s28
        $region60: #{tpu_custom_call.1} parent=55 // pred_fallthru
          _
        // Predicated region
        $region61: #{tpu_custom_call.1} parent=55 // pred_check
          %p440 = pneg %p95
        $region62: #{tpu_custom_call.1} parent=55 // pred_check_branch
          %442 = sbr.rel (%p440) target = $region64
        $region63: #{tpu_custom_call.1} parent=55 // pred_region
          %s443 = sand.u32 %s85, 1
          %s444 = scalar_lea.sflag [#allocation4], %s443
          %s445 = sand.u32 %s85, 1
          %s446 = smul.addr %s445, 160
          %s447 = scalar_lea.vmem [#allocation3], %s446
          %s448 = smul.u32 5, %s28
          %s450 = ssub.s32 2560, 2560
          %451 = vsyncadd %s444, %s450
          %s452 = smul.addr %s448, 8
          %s453 = smul.addr %s452, 64
          %s454 = scalar_lea.hbm %s2, %s453
          %s455 = sshll.u32 %s447, 4
          %s456 = int_to_ptr.vmem [resolvable:$true] %s455
          %461 = dma.hbm_to_vmem [thread:$0]  %s454, 2560, %s456, %s444, 64, 64, 4
        $region64: #{tpu_custom_call.1} parent=55 // pred_fallthru
          _
        // Predicated region
        $region65: #{tpu_custom_call.1} parent=55 // pred_check
          %p462 = pneg %p121
        $region66: #{tpu_custom_call.1} parent=55 // pred_check_branch
          %464 = sbr.rel (%p462) target = $region68
        $region67: #{tpu_custom_call.1} parent=55 // pred_region
          %s465 = smul.u32 5, %s28
          %p466 = scmp.lt.s32.totalorder %s465, 9
          %s467 = scalar_select %p466, %s465, 9
          %s468 = smul.addr %s467, 4
          %s469 = scalar_lea.vmem %s3, %s468
          %s470 = smul.u32 5, %s28
        $region68: #{tpu_custom_call.1} parent=55 // pred_fallthru
          _
      $region56: #{tpu_custom_call.1} parent=5 // pred_fallthru
        _
      %p471 = scmp.le.s32.totalorder 1, %s28
      %p472 = scmp.lt.s32.totalorder %s28, 3
      %p473 = pnand %p471, %p472
      %p474 = pneg %p473
      // Predicated region
      $region69: #{tpu_custom_call.1} parent=5 // pred_check
        _
      $region70: #{tpu_custom_call.1} parent=5 // pred_check_branch
        %476 = sbr.rel (%p473) target = $region72
      $region71: #{tpu_custom_call.1} parent=5 // pred_region
        %s477 = ssub.s32 %s28, 1
        %s478 = sand.u32 %s88, 1
        %s479 = scalar_lea.sflag [#allocation4], %s478
        %s480 = sand.u32 %s88, 1
        %s481 = smul.addr %s480, 160
        %s482 = scalar_lea.vmem [#allocation3], %s481
        // Predicated region
        $region73: #{tpu_custom_call.1} parent=71 // pred_check
          %p483 = pneg %p101
        $region74: #{tpu_custom_call.1} parent=71 // pred_check_branch
          %485 = sbr.rel (%p483) target = $region76
        $region75: #{tpu_custom_call.1} parent=71 // pred_region
          %486 = dma.done %s479, 2560
        $region76: #{tpu_custom_call.1} parent=71 // pred_fallthru
          _
        // Predicated region
        $region77: #{tpu_custom_call.1} parent=71 // pred_check
          %p487 = pneg %p148
        $region78: #{tpu_custom_call.1} parent=71 // pred_check_branch
          %489 = sbr.rel (%p487) target = $region80
        $region79: #{tpu_custom_call.1} parent=71 // pred_region
          %490 = dma.done [#allocation7], 256
        $region80: #{tpu_custom_call.1} parent=71 // pred_fallthru
          _
        // Predicated region
        $region81: #{tpu_custom_call.1} parent=71 // pred_check
          %p491 = pneg %p211
        $region82: #{tpu_custom_call.1} parent=71 // pred_check_branch
          %493 = sbr.rel (%p491) target = $region84
        $region83: #{tpu_custom_call.1} parent=71 // pred_region
          %494 = dma.done [#allocation7], 256
        $region84: #{tpu_custom_call.1} parent=71 // pred_fallthru
          _
        // Predicated region
        $region85: #{tpu_custom_call.1} parent=71 // pred_check
          %p495 = pneg %p253
        $region86: #{tpu_custom_call.1} parent=71 // pred_check_branch
          %497 = sbr.rel (%p495) target = $region88
        $region87: #{tpu_custom_call.1} parent=71 // pred_region
          %498 = dma.done [#allocation10], 512
        $region88: #{tpu_custom_call.1} parent=71 // pred_fallthru
          _
        // Predicated region
        $region89: #{tpu_custom_call.1} parent=71 // pred_check
          %p499 = pneg %p295
        $region90: #{tpu_custom_call.1} parent=71 // pred_check_branch
          %501 = sbr.rel (%p499) target = $region92
        $region91: #{tpu_custom_call.1} parent=71 // pred_region
          %502 = dma.done [#allocation10], 512
        $region92: #{tpu_custom_call.1} parent=71 // pred_fallthru
          _
        %p503 = pneg %p49
        %p504 = pneg %p46
        %s505 = smul.u32 5, %s33
        %p506 = scmp.lt.s32.totalorder %s505, 9
        %s507 = scalar_select %p506, %s505, 9
        %s508 = smul.addr %s507, 4
        %s509 = scalar_lea.vmem %s1, %s508
        %p510 = pneg %p75
        %p511 = pneg %p72
        %s512 = sand.u32 %s88, 1
        %s513 = scalar_lea.sflag [#allocation4], %s512
        %s514 = sand.u32 %s88, 1
        %s515 = smul.addr %s514, 160
        %s516 = scalar_lea.vmem [#allocation3], %s515
        %p517 = pneg %p101
        %p518 = pneg %p98
        %s519 = smul.u32 5, %s33
        %p520 = scmp.lt.s32.totalorder %s519, 9
        %s521 = scalar_select %p520, %s519, 9
        %s522 = smul.addr %s521, 4
        %s523 = scalar_lea.vmem %s3, %s522
        %p524 = pneg %p127
        %p525 = pneg %p124
        %p526 = pneg %p148
        %p527 = pneg %p145
        %p528 = pneg %p169
        %p529 = pneg %p166
        %p530 = pneg %p190
        %p531 = pneg %p187
        %p532 = pneg %p211
        %p533 = pneg %p208
        %p534 = pneg %p232
        %p535 = pneg %p229
        %p536 = pneg %p253
        %p537 = pneg %p250
        %p538 = pneg %p274
        %p539 = pneg %p271
        %p540 = pneg %p295
        %p541 = pneg %p292
        %p542 = pneg %p316
        %p543 = pneg %p313
        %p544 = pneg %p342
        %p545 = pneg %p339
        %s546 = sand.u32 %s329, 1
        %s547 = scalar_lea.sflag [#allocation5], %s546
        %s548 = sand.u32 %s329, 1
        %s549 = smul.addr %s548, 40
        %s550 = scalar_lea.vmem [#allocation12], %s549
        %s551 = smul.u32 5, %s33
        %p552 = scmp.lt.s32.totalorder %s551, 9
        %s553 = scalar_select %p552, %s551, 9
        %s554 = smul.addr %s553, 4
        %s555 = scalar_lea.vmem %s1, %s554
        %s556 = smul.u32 5, %s33
        %s557 = smul.u32 5, %s33
        %s558 = smul.u32 5, %s33
        %p559 = scmp.lt.s32.totalorder %s558, 9
        %s560 = scalar_select %p559, %s558, 9
        %s561 = smul.addr %s560, 4
        %s562 = scalar_lea.vmem %s3, %s561
        %s563 = smul.u32 5, %s33
        %s564 = smul.u32 5, %s33
        %v565 = vld [vmem:[%s555] sm:$0xf]
        %v566 = vld [vmem:[%s555 + $0x4] sm:$0xf]
        %v567 = vld [vmem:[%s555 + $0x8] sm:$0xf]
        %v568 = vld [vmem:[%s555 + $0xc] sm:$0xf]
        %v569 = vld [vmem:[%s555 + $0x10] sm:$0xf]
        %v570 = vunpack.c.l.bf16 %v565
        %v571 = vunpack.c.l.bf16 %v566
        %v572 = vunpack.c.l.bf16 %v567
        %v573 = vunpack.c.l.bf16 %v568
        %v574 = vunpack.c.l.bf16 %v569
        %v575 = vld [vmem:[%s562] sm:$0xf]
        %v576 = vld [vmem:[%s562 + $0x4] sm:$0xf]
        %v577 = vld [vmem:[%s562 + $0x8] sm:$0xf]
        %v578 = vld [vmem:[%s562 + $0xc] sm:$0xf]
        %v579 = vld [vmem:[%s562 + $0x10] sm:$0xf]
        %v580 = vunpack.c.l.bf16 %v575
        %v581 = vunpack.c.l.bf16 %v576
        %v582 = vunpack.c.l.bf16 %v577
        %v583 = vunpack.c.l.bf16 %v578
        %v584 = vunpack.c.l.bf16 %v579
        %v585 = vld [vmem:[%s482] sm:$0xf]
        %v586 = vld [vmem:[%s482 + $0x4] sm:$0xf]
        %v587 = vld [vmem:[%s482 + $0x8] sm:$0xf]
        %v588 = vld [vmem:[%s482 + $0xc] sm:$0xf]
        %v589 = vld [vmem:[%s482 + $0x10] sm:$0xf]
        %v590 = vld [vmem:[%s482 + $0x14] sm:$0xf]
        %v591 = vld [vmem:[%s482 + $0x18] sm:$0xf]
        %v592 = vld [vmem:[%s482 + $0x1c] sm:$0xf]
        %v593 = vld [vmem:[%s482 + $0x20] sm:$0xf]
        %v594 = vld [vmem:[%s482 + $0x24] sm:$0xf]
        %v595 = vld [vmem:[%s482 + $0x28] sm:$0xf]
        %v596 = vld [vmem:[%s482 + $0x2c] sm:$0xf]
        %v597 = vld [vmem:[%s482 + $0x30] sm:$0xf]
        %v598 = vld [vmem:[%s482 + $0x34] sm:$0xf]
        %v599 = vld [vmem:[%s482 + $0x38] sm:$0xf]
        %v600 = vld [vmem:[%s482 + $0x3c] sm:$0xf]
        %v601 = vld [vmem:[%s482 + $0x40] sm:$0xf]
        %v602 = vld [vmem:[%s482 + $0x44] sm:$0xf]
        %v603 = vld [vmem:[%s482 + $0x48] sm:$0xf]
        %v604 = vld [vmem:[%s482 + $0x4c] sm:$0xf]
        %v605 = vld [vmem:[%s482 + $0x50] sm:$0xf]
        %v606 = vld [vmem:[%s482 + $0x54] sm:$0xf]
        %v607 = vld [vmem:[%s482 + $0x58] sm:$0xf]
        %v608 = vld [vmem:[%s482 + $0x5c] sm:$0xf]
        %v609 = vld [vmem:[%s482 + $0x60] sm:$0xf]
        %v610 = vld [vmem:[%s482 + $0x64] sm:$0xf]
        %v611 = vld [vmem:[%s482 + $0x68] sm:$0xf]
        %v612 = vld [vmem:[%s482 + $0x6c] sm:$0xf]
        %v613 = vld [vmem:[%s482 + $0x70] sm:$0xf]
        %v614 = vld [vmem:[%s482 + $0x74] sm:$0xf]
        %v615 = vld [vmem:[%s482 + $0x78] sm:$0xf]
        %v616 = vld [vmem:[%s482 + $0x7c] sm:$0xf]
        %v617 = vld [vmem:[%s482 + $0x80] sm:$0xf]
        %v618 = vld [vmem:[%s482 + $0x84] sm:$0xf]
        %v619 = vld [vmem:[%s482 + $0x88] sm:$0xf]
        %v620 = vld [vmem:[%s482 + $0x8c] sm:$0xf]
        %v621 = vld [vmem:[%s482 + $0x90] sm:$0xf]
        %v622 = vld [vmem:[%s482 + $0x94] sm:$0xf]
        %v623 = vld [vmem:[%s482 + $0x98] sm:$0xf]
        %v624 = vld [vmem:[%s482 + $0x9c] sm:$0xf]
        %v625 = vunpack.c.l.bf16 %v585
        %v626 = vunpack.c.l.bf16 %v586
        %v627 = vunpack.c.l.bf16 %v587
        %v628 = vunpack.c.l.bf16 %v588
        %v629 = vunpack.c.l.bf16 %v589
        %v630 = vunpack.c.l.bf16 %v590
        %v631 = vunpack.c.l.bf16 %v591
        %v632 = vunpack.c.l.bf16 %v592
        %v633 = vunpack.c.l.bf16 %v593
        %v634 = vunpack.c.l.bf16 %v594
        %v635 = vunpack.c.l.bf16 %v595
        %v636 = vunpack.c.l.bf16 %v596
        %v637 = vunpack.c.l.bf16 %v597
        %v638 = vunpack.c.l.bf16 %v598
        %v639 = vunpack.c.l.bf16 %v599
        %v640 = vunpack.c.l.bf16 %v600
        %v641 = vunpack.c.l.bf16 %v601
        %v642 = vunpack.c.l.bf16 %v602
        %v643 = vunpack.c.l.bf16 %v603
        %v644 = vunpack.c.l.bf16 %v604
        %v645 = vunpack.c.l.bf16 %v605
        %v646 = vunpack.c.l.bf16 %v606
        %v647 = vunpack.c.l.bf16 %v607
        %v648 = vunpack.c.l.bf16 %v608
        %v649 = vunpack.c.l.bf16 %v609
        %v650 = vunpack.c.l.bf16 %v610
        %v651 = vunpack.c.l.bf16 %v611
        %v652 = vunpack.c.l.bf16 %v612
        %v653 = vunpack.c.l.bf16 %v613
        %v654 = vunpack.c.l.bf16 %v614
        %v655 = vunpack.c.l.bf16 %v615
        %v656 = vunpack.c.l.bf16 %v616
        %v657 = vunpack.c.l.bf16 %v617
        %v658 = vunpack.c.l.bf16 %v618
        %v659 = vunpack.c.l.bf16 %v619
        %v660 = vunpack.c.l.bf16 %v620
        %v661 = vunpack.c.l.bf16 %v621
        %v662 = vunpack.c.l.bf16 %v622
        %v663 = vunpack.c.l.bf16 %v623
        %v664 = vunpack.c.l.bf16 %v624
        %v665 = vld [vmem:[#allocation6] sm:$0xff]
        %v666 = vld [vmem:[#allocation6 + $0x8] sm:$0xff]
        %v667 = vld [vmem:[%s5] sm:$0x1]
        %v669 = vlaneseq
        %v670 = vshrl.u32 %v669, 7
        %v671 = vsub.s32 0, %v670
        %v672 = vrot.slane %v667, %v671
        %vm674 = vcmask 130048
        %v676 = vsel %vm674, %v625, 0
        %v679 = vsel %vm674, %v626, 0
        %v682 = vsel %vm674, %v627, 0
        %v685 = vsel %vm674, %v628, 0
        %v688 = vsel %vm674, %v629, 0
        %v691 = vsel %vm674, %v630, 0
        %v694 = vsel %vm674, %v631, 0
        %v697 = vsel %vm674, %v632, 0
        %v700 = vsel %vm674, %v633, 0
        %v703 = vsel %vm674, %v634, 0
        %v706 = vsel %vm674, %v635, 0
        %v709 = vsel %vm674, %v636, 0
        %v712 = vsel %vm674, %v637, 0
        %v715 = vsel %vm674, %v638, 0
        %v718 = vsel %vm674, %v639, 0
        %v721 = vsel %vm674, %v640, 0
        %v724 = vsel %vm674, %v641, 0
        %v727 = vsel %vm674, %v642, 0
        %v730 = vsel %vm674, %v643, 0
        %v733 = vsel %vm674, %v644, 0
        %v736 = vsel %vm674, %v645, 0
        %v739 = vsel %vm674, %v646, 0
        %v742 = vsel %vm674, %v647, 0
        %v745 = vsel %vm674, %v648, 0
        %v748 = vsel %vm674, %v649, 0
        %v751 = vsel %vm674, %v650, 0
        %v754 = vsel %vm674, %v651, 0
        %v757 = vsel %vm674, %v652, 0
        %v760 = vsel %vm674, %v653, 0
        %v763 = vsel %vm674, %v654, 0
        %v766 = vsel %vm674, %v655, 0
        %v769 = vsel %vm674, %v656, 0
        %v772 = vsel %vm674, %v657, 0
        %v775 = vsel %vm674, %v658, 0
        %v778 = vsel %vm674, %v659, 0
        %v781 = vsel %vm674, %v660, 0
        %v784 = vsel %vm674, %v661, 0
        %v787 = vsel %vm674, %v662, 0
        %v790 = vsel %vm674, %v663, 0
        %v793 = vsel %vm674, %v664, 0
        %795 = vmatprep.subr.mxu0 0.0
        %796 = vmatpush1.msra.mxu0 0.0
        %797 = vmatprep.subr.mxu0 0.0
        %798 = vmatpush1.msra.mxu0 0.0
        %799 = vmatprep.subr.mxu0 0.0
        %800 = vmatpush1.msra.mxu0 0.0
        %801 = vmatprep.subr.mxu0 0.0
        %802 = vmatpush1.msra.mxu0 0.0
        %803 = vmatprep.subr.mxu0 0.0
        %804 = vmatpush1.msra.mxu0 0.0
        %805 = vmatprep.subr.mxu0 0.0
        %806 = vmatpush1.msra.mxu0 0.0
        %807 = vmatprep.subr.mxu0 0.0
        %808 = vmatpush1.msra.mxu0 0.0
        %809 = vmatprep.subr.mxu0 0.0
        %810 = vmatpush1.msra.mxu0 0.0
        %811 = vmatprep.subr.mxu0 0.0
        %812 = vmatpush1.msra.mxu0 0.0
        %813 = vmatprep.subr.mxu0 0.0
        %814 = vmatpush1.msra.mxu0 0.0
        %815 = vmatprep.subr.mxu0 0.0
        %816 = vmatpush1.msra.mxu0 0.0
        %817 = vmatprep.subr.mxu0 0.0
        %818 = vmatpush1.msra.mxu0 0.0
        %819 = vmatprep.subr.mxu0 0.0
        %820 = vmatpush1.msra.mxu0 0.0
        %821 = vmatprep.subr.mxu0 0.0
        %822 = vmatpush1.msra.mxu0 0.0
        %823 = vmatprep.subr.mxu0 0.0
        %824 = vmatpush1.msra.mxu0 %v666
        %825 = vmatprep.subr.mxu0 0.0
        %826 = vmatpush1.msra.mxu0 %v665
        %827 = vmatprep.subr.mxu0 0.0
        %828 = vmatpush2.msra.mxu0 0.0
        %829 = vmatprep.subr.mxu0 0.0
        %830 = vmatpush2.msra.mxu0 0.0
        %831 = vmatprep.subr.mxu0 0.0
        %832 = vmatpush2.msra.mxu0 0.0
        %833 = vmatprep.subr.mxu0 0.0
        %834 = vmatpush2.msra.mxu0 0.0
        %835 = vmatprep.subr.mxu0 0.0
        %836 = vmatpush2.msra.mxu0 0.0
        %837 = vmatprep.subr.mxu0 0.0
        %838 = vmatpush2.msra.mxu0 0.0
        %839 = vmatprep.subr.mxu0 0.0
        %840 = vmatpush2.msra.mxu0 0.0
        %841 = vmatprep.subr.mxu0 0.0
        %842 = vmatpush2.msra.mxu0 0.0
        %843 = vmatprep.subr.mxu0 0.0
        %844 = vmatpush2.msra.mxu0 0.0
        %845 = vmatprep.subr.mxu0 0.0
        %846 = vmatpush2.msra.mxu0 0.0
        %847 = vmatprep.subr.mxu0 0.0
        %848 = vmatpush2.msra.mxu0 0.0
        %849 = vmatprep.subr.mxu0 0.0
        %850 = vmatpush2.msra.mxu0 0.0
        %851 = vmatprep.subr.mxu0 0.0
        %852 = vmatpush2.msra.mxu0 0.0
        %853 = vmatprep.subr.mxu0 0.0
        %854 = vmatpush2.msra.mxu0 0.0
        %855 = vmatprep.subr.mxu0 0.0
        %856 = vmatpush2.msra.mxu0 0.0
        %857 = vmatprep.subr.mxu0 0.0
        %858 = vmatpush2.msra.mxu0 0.0
        %859 = vmatprep.mubr.f32.mxu0 0.0
        %860 = vmatmul.mubr.f32.gmra.mxu0 %v676
        %v861 = vpop.f32.mrf.mxu0
        %v862 = vadd.f32 %v672, %v861
        %v863 = vpop.f32.mrf.mxu0
        %864 = vmatprep.mubr.f32.mxu0 0.0
        %865 = vmatmul.mubr.f32.gmra.mxu0 %v679
        %v866 = vpop.f32.mrf.mxu0
        %v867 = vadd.f32 %v672, %v866
        %v868 = vpop.f32.mrf.mxu0
        %869 = vmatprep.mubr.f32.mxu0 0.0
        %870 = vmatmul.mubr.f32.gmra.mxu0 %v682
        %v871 = vpop.f32.mrf.mxu0
        %v872 = vadd.f32 %v672, %v871
        %v873 = vpop.f32.mrf.mxu0
        %874 = vmatprep.mubr.f32.mxu0 0.0
        %875 = vmatmul.mubr.f32.gmra.mxu0 %v685
        %v876 = vpop.f32.mrf.mxu0
        %v877 = vadd.f32 %v672, %v876
        %v878 = vpop.f32.mrf.mxu0
        %879 = vmatprep.mubr.f32.mxu0 0.0
        %880 = vmatmul.mubr.f32.gmra.mxu0 %v688
        %v881 = vpop.f32.mrf.mxu0
        %v882 = vadd.f32 %v672, %v881
        %v883 = vpop.f32.mrf.mxu0
        %884 = vmatprep.mubr.f32.mxu0 0.0
        %885 = vmatmul.mubr.f32.gmra.mxu0 %v691
        %v886 = vpop.f32.mrf.mxu0
        %v887 = vadd.f32 %v672, %v886
        %v888 = vpop.f32.mrf.mxu0
        %889 = vmatprep.mubr.f32.mxu0 0.0
        %890 = vmatmul.mubr.f32.gmra.mxu0 %v694
        %v891 = vpop.f32.mrf.mxu0
        %v892 = vadd.f32 %v672, %v891
        %v893 = vpop.f32.mrf.mxu0
        %894 = vmatprep.mubr.f32.mxu0 0.0
        %895 = vmatmul.mubr.f32.gmra.mxu0 %v697
        %v896 = vpop.f32.mrf.mxu0
        %v897 = vadd.f32 %v672, %v896
        %v898 = vpop.f32.mrf.mxu0
        %899 = vmatprep.mubr.f32.mxu0 0.0
        %900 = vmatmul.mubr.f32.gmra.mxu0 %v700
        %v901 = vpop.f32.mrf.mxu0
        %v902 = vadd.f32 %v672, %v901
        %v903 = vpop.f32.mrf.mxu0
        %904 = vmatprep.mubr.f32.mxu0 0.0
        %905 = vmatmul.mubr.f32.gmra.mxu0 %v703
        %v906 = vpop.f32.mrf.mxu0
        %v907 = vadd.f32 %v672, %v906
        %v908 = vpop.f32.mrf.mxu0
        %909 = vmatprep.mubr.f32.mxu0 0.0
        %910 = vmatmul.mubr.f32.gmra.mxu0 %v706
        %v911 = vpop.f32.mrf.mxu0
        %v912 = vadd.f32 %v672, %v911
        %v913 = vpop.f32.mrf.mxu0
        %914 = vmatprep.mubr.f32.mxu0 0.0
        %915 = vmatmul.mubr.f32.gmra.mxu0 %v709
        %v916 = vpop.f32.mrf.mxu0
        %v917 = vadd.f32 %v672, %v916
        %v918 = vpop.f32.mrf.mxu0
        %919 = vmatprep.mubr.f32.mxu0 0.0
        %920 = vmatmul.mubr.f32.gmra.mxu0 %v712
        %v921 = vpop.f32.mrf.mxu0
        %v922 = vadd.f32 %v672, %v921
        %v923 = vpop.f32.mrf.mxu0
        %924 = vmatprep.mubr.f32.mxu0 0.0
        %925 = vmatmul.mubr.f32.gmra.mxu0 %v715
        %v926 = vpop.f32.mrf.mxu0
        %v927 = vadd.f32 %v672, %v926
        %v928 = vpop.f32.mrf.mxu0
        %929 = vmatprep.mubr.f32.mxu0 0.0
        %930 = vmatmul.mubr.f32.gmra.mxu0 %v718
        %v931 = vpop.f32.mrf.mxu0
        %v932 = vadd.f32 %v672, %v931
        %v933 = vpop.f32.mrf.mxu0
        %934 = vmatprep.mubr.f32.mxu0 0.0
        %935 = vmatmul.mubr.f32.gmra.mxu0 %v721
        %v936 = vpop.f32.mrf.mxu0
        %v937 = vadd.f32 %v672, %v936
        %v938 = vpop.f32.mrf.mxu0
        %939 = vmatprep.mubr.f32.mxu0 0.0
        %940 = vmatmul.mubr.f32.gmra.mxu0 %v724
        %v941 = vpop.f32.mrf.mxu0
        %v942 = vadd.f32 %v672, %v941
        %v943 = vpop.f32.mrf.mxu0
        %944 = vmatprep.mubr.f32.mxu0 0.0
        %945 = vmatmul.mubr.f32.gmra.mxu0 %v727
        %v946 = vpop.f32.mrf.mxu0
        %v947 = vadd.f32 %v672, %v946
        %v948 = vpop.f32.mrf.mxu0
        %949 = vmatprep.mubr.f32.mxu0 0.0
        %950 = vmatmul.mubr.f32.gmra.mxu0 %v730
        %v951 = vpop.f32.mrf.mxu0
        %v952 = vadd.f32 %v672, %v951
        %v953 = vpop.f32.mrf.mxu0
        %954 = vmatprep.mubr.f32.mxu0 0.0
        %955 = vmatmul.mubr.f32.gmra.mxu0 %v733
        %v956 = vpop.f32.mrf.mxu0
        %v957 = vadd.f32 %v672, %v956
        %v958 = vpop.f32.mrf.mxu0
        %959 = vmatprep.mubr.f32.mxu0 0.0
        %960 = vmatmul.mubr.f32.gmra.mxu0 %v736
        %v961 = vpop.f32.mrf.mxu0
        %v962 = vadd.f32 %v672, %v961
        %v963 = vpop.f32.mrf.mxu0
        %964 = vmatprep.mubr.f32.mxu0 0.0
        %965 = vmatmul.mubr.f32.gmra.mxu0 %v739
        %v966 = vpop.f32.mrf.mxu0
        %v967 = vadd.f32 %v672, %v966
        %v968 = vpop.f32.mrf.mxu0
        %969 = vmatprep.mubr.f32.mxu0 0.0
        %970 = vmatmul.mubr.f32.gmra.mxu0 %v742
        %v971 = vpop.f32.mrf.mxu0
        %v972 = vadd.f32 %v672, %v971
        %v973 = vpop.f32.mrf.mxu0
        %974 = vmatprep.mubr.f32.mxu0 0.0
        %975 = vmatmul.mubr.f32.gmra.mxu0 %v745
        %v976 = vpop.f32.mrf.mxu0
        %v977 = vadd.f32 %v672, %v976
        %v978 = vpop.f32.mrf.mxu0
        %979 = vmatprep.mubr.f32.mxu0 0.0
        %980 = vmatmul.mubr.f32.gmra.mxu0 %v748
        %v981 = vpop.f32.mrf.mxu0
        %v982 = vadd.f32 %v672, %v981
        %v983 = vpop.f32.mrf.mxu0
        %984 = vmatprep.mubr.f32.mxu0 0.0
        %985 = vmatmul.mubr.f32.gmra.mxu0 %v751
        %v986 = vpop.f32.mrf.mxu0
        %v987 = vadd.f32 %v672, %v986
        %v988 = vpop.f32.mrf.mxu0
        %989 = vmatprep.mubr.f32.mxu0 0.0
        %990 = vmatmul.mubr.f32.gmra.mxu0 %v754
        %v991 = vpop.f32.mrf.mxu0
        %v992 = vadd.f32 %v672, %v991
        %v993 = vpop.f32.mrf.mxu0
        %994 = vmatprep.mubr.f32.mxu0 0.0
        %995 = vmatmul.mubr.f32.gmra.mxu0 %v757
        %v996 = vpop.f32.mrf.mxu0
        %v997 = vadd.f32 %v672, %v996
        %v998 = vpop.f32.mrf.mxu0
        %999 = vmatprep.mubr.f32.mxu0 0.0
        %1000 = vmatmul.mubr.f32.gmra.mxu0 %v760
        %v1001 = vpop.f32.mrf.mxu0
        %v1002 = vadd.f32 %v672, %v1001
        %v1003 = vpop.f32.mrf.mxu0
        %1004 = vmatprep.mubr.f32.mxu0 0.0
        %1005 = vmatmul.mubr.f32.gmra.mxu0 %v763
        %v1006 = vpop.f32.mrf.mxu0
        %v1007 = vadd.f32 %v672, %v1006
        %v1008 = vpop.f32.mrf.mxu0
        %1009 = vmatprep.mubr.f32.mxu0 0.0
        %1010 = vmatmul.mubr.f32.gmra.mxu0 %v766
        %v1011 = vpop.f32.mrf.mxu0
        %v1012 = vadd.f32 %v672, %v1011
        %v1013 = vpop.f32.mrf.mxu0
        %1014 = vmatprep.mubr.f32.mxu0 0.0
        %1015 = vmatmul.mubr.f32.gmra.mxu0 %v769
        %v1016 = vpop.f32.mrf.mxu0
        %v1017 = vadd.f32 %v672, %v1016
        %v1018 = vpop.f32.mrf.mxu0
        %1019 = vmatprep.mubr.f32.mxu0 0.0
        %1020 = vmatmul.mubr.f32.gmra.mxu0 %v772
        %v1021 = vpop.f32.mrf.mxu0
        %v1022 = vadd.f32 %v672, %v1021
        %v1023 = vpop.f32.mrf.mxu0
        %1024 = vmatprep.mubr.f32.mxu0 0.0
        %1025 = vmatmul.mubr.f32.gmra.mxu0 %v775
        %v1026 = vpop.f32.mrf.mxu0
        %v1027 = vadd.f32 %v672, %v1026
        %v1028 = vpop.f32.mrf.mxu0
        %1029 = vmatprep.mubr.f32.mxu0 0.0
        %1030 = vmatmul.mubr.f32.gmra.mxu0 %v778
        %v1031 = vpop.f32.mrf.mxu0
        %v1032 = vadd.f32 %v672, %v1031
        %v1033 = vpop.f32.mrf.mxu0
        %1034 = vmatprep.mubr.f32.mxu0 0.0
        %1035 = vmatmul.mubr.f32.gmra.mxu0 %v781
        %v1036 = vpop.f32.mrf.mxu0
        %v1037 = vadd.f32 %v672, %v1036
        %v1038 = vpop.f32.mrf.mxu0
        %1039 = vmatprep.mubr.f32.mxu0 0.0
        %1040 = vmatmul.mubr.f32.gmra.mxu0 %v784
        %v1041 = vpop.f32.mrf.mxu0
        %v1042 = vadd.f32 %v672, %v1041
        %v1043 = vpop.f32.mrf.mxu0
        %1044 = vmatprep.mubr.f32.mxu0 0.0
        %1045 = vmatmul.mubr.f32.gmra.mxu0 %v787
        %v1046 = vpop.f32.mrf.mxu0
        %v1047 = vadd.f32 %v672, %v1046
        %v1048 = vpop.f32.mrf.mxu0
        %1049 = vmatprep.mubr.f32.mxu0 0.0
        %1050 = vmatmul.mubr.f32.gmra.mxu0 %v790
        %v1051 = vpop.f32.mrf.mxu0
        %v1052 = vadd.f32 %v672, %v1051
        %v1053 = vpop.f32.mrf.mxu0
        %1054 = vmatprep.mubr.f32.mxu0 0.0
        %1055 = vmatmul.mubr.f32.gmra.mxu0 %v793
        %v1056 = vpop.f32.mrf.mxu0
        %v1057 = vadd.f32 %v672, %v1056
        %v1058 = vpop.f32.mrf.mxu0
        %1059 = vdwg.mxu0
        %v1060 = vmax.f32 %v862, 0.0
        %v1061 = vmax.f32 %v867, 0.0
        %v1062 = vmax.f32 %v872, 0.0
        %v1063 = vmax.f32 %v877, 0.0
        %v1064 = vmax.f32 %v882, 0.0
        %v1065 = vmax.f32 %v887, 0.0
        %v1066 = vmax.f32 %v892, 0.0
        %v1067 = vmax.f32 %v897, 0.0
        %v1068 = vmax.f32 %v902, 0.0
        %v1069 = vmax.f32 %v907, 0.0
        %v1070 = vmax.f32 %v912, 0.0
        %v1071 = vmax.f32 %v917, 0.0
        %v1072 = vmax.f32 %v922, 0.0
        %v1073 = vmax.f32 %v927, 0.0
        %v1074 = vmax.f32 %v932, 0.0
        %v1075 = vmax.f32 %v937, 0.0
        %v1076 = vmax.f32 %v942, 0.0
        %v1077 = vmax.f32 %v947, 0.0
        %v1078 = vmax.f32 %v952, 0.0
        %v1079 = vmax.f32 %v957, 0.0
        %v1080 = vmax.f32 %v962, 0.0
        %v1081 = vmax.f32 %v967, 0.0
        %v1082 = vmax.f32 %v972, 0.0
        %v1083 = vmax.f32 %v977, 0.0
        %v1084 = vmax.f32 %v982, 0.0
        %v1085 = vmax.f32 %v987, 0.0
        %v1086 = vmax.f32 %v992, 0.0
        %v1087 = vmax.f32 %v997, 0.0
        %v1088 = vmax.f32 %v1002, 0.0
        %v1089 = vmax.f32 %v1007, 0.0
        %v1090 = vmax.f32 %v1012, 0.0
        %v1091 = vmax.f32 %v1017, 0.0
        %v1092 = vmax.f32 %v1022, 0.0
        %v1093 = vmax.f32 %v1027, 0.0
        %v1094 = vmax.f32 %v1032, 0.0
        %v1095 = vmax.f32 %v1037, 0.0
        %v1096 = vmax.f32 %v1042, 0.0
        %v1097 = vmax.f32 %v1047, 0.0
        %v1098 = vmax.f32 %v1052, 0.0
        %v1099 = vmax.f32 %v1057, 0.0
        %v1100 = vlaneseq
        %v1101 = vshrl.u32 %v1100, 7
        %v1102 = vsub.s32 0, %v1101
        %v1103 = vrot.slane %v580, %v1102
        %1105 = vbcast.lane.b32.xlu0 %v1103, 256
        %v1106 = vpop.permute.xlu0 %1105
        %v1107 = vlaneseq
        %v1108 = vshrl.u32 %v1107, 7
        %v1109 = vsub.s32 0, %v1108
        %v1110 = vrot.slane %v581, %v1109
        %1112 = vbcast.lane.b32.xlu0 %v1110, 256
        %v1113 = vpop.permute.xlu0 %1112
        %v1114 = vlaneseq
        %v1115 = vshrl.u32 %v1114, 7
        %v1116 = vsub.s32 0, %v1115
        %v1117 = vrot.slane %v582, %v1116
        %1119 = vbcast.lane.b32.xlu0 %v1117, 256
        %v1120 = vpop.permute.xlu0 %1119
        %v1121 = vlaneseq
        %v1122 = vshrl.u32 %v1121, 7
        %v1123 = vsub.s32 0, %v1122
        %v1124 = vrot.slane %v583, %v1123
        %1126 = vbcast.lane.b32.xlu0 %v1124, 256
        %v1127 = vpop.permute.xlu0 %1126
        %v1128 = vlaneseq
        %v1129 = vshrl.u32 %v1128, 7
        %v1130 = vsub.s32 0, %v1129
        %v1131 = vrot.slane %v584, %v1130
        %1133 = vbcast.lane.b32.xlu0 %v1131, 256
        %v1134 = vpop.permute.xlu0 %1133
        %v1135 = vlaneseq
        %v1136 = vshrl.u32 %v1135, 7
        %v1137 = vsub.s32 0, %v1136
        %v1138 = vrot.slane %v570, %v1137
        %v1139 = vlaneseq
        %v1140 = vshrl.u32 %v1139, 7
        %v1141 = vsub.s32 0, %v1140
        %v1142 = vrot.slane %v571, %v1141
        %v1143 = vlaneseq
        %v1144 = vshrl.u32 %v1143, 7
        %v1145 = vsub.s32 0, %v1144
        %v1146 = vrot.slane %v572, %v1145
        %v1147 = vlaneseq
        %v1148 = vshrl.u32 %v1147, 7
        %v1149 = vsub.s32 0, %v1148
        %v1150 = vrot.slane %v573, %v1149
        %v1151 = vlaneseq
        %v1152 = vshrl.u32 %v1151, 7
        %v1153 = vsub.s32 0, %v1152
        %v1154 = vrot.slane %v574, %v1153
        %v1155 = vmul.f32 %v1106, %v1138
        %v1156 = vmul.f32 %v1113, %v1142
        %v1157 = vmul.f32 %v1120, %v1146
        %v1158 = vmul.f32 %v1127, %v1150
        %v1159 = vmul.f32 %v1134, %v1154
        %v1160 = vmul.f32 %v1106, %v1060
        %v1161 = vmul.f32 %v1113, %v1068
        %v1162 = vmul.f32 %v1120, %v1076
        %v1163 = vmul.f32 %v1127, %v1084
        %v1164 = vmul.f32 %v1134, %v1092
        %v1165 = vlaneseq
        %v1166 = vshrl.u32 %v1165, 7
        %v1167 = vsub.s32 1, %v1166
        %v1168 = vrot.slane %v580, %v1167
        %1170 = vbcast.lane.b32.xlu0 %v1168, 256
        %v1171 = vpop.permute.xlu0 %1170
        %v1172 = vlaneseq
        %v1173 = vshrl.u32 %v1172, 7
        %v1174 = vsub.s32 1, %v1173
        %v1175 = vrot.slane %v581, %v1174
        %1177 = vbcast.lane.b32.xlu0 %v1175, 256
        %v1178 = vpop.permute.xlu0 %1177
        %v1179 = vlaneseq
        %v1180 = vshrl.u32 %v1179, 7
        %v1181 = vsub.s32 1, %v1180
        %v1182 = vrot.slane %v582, %v1181
        %1184 = vbcast.lane.b32.xlu0 %v1182, 256
        %v1185 = vpop.permute.xlu0 %1184
        %v1186 = vlaneseq
        %v1187 = vshrl.u32 %v1186, 7
        %v1188 = vsub.s32 1, %v1187
        %v1189 = vrot.slane %v583, %v1188
        %1191 = vbcast.lane.b32.xlu0 %v1189, 256
        %v1192 = vpop.permute.xlu0 %1191
        %v1193 = vlaneseq
        %v1194 = vshrl.u32 %v1193, 7
        %v1195 = vsub.s32 1, %v1194
        %v1196 = vrot.slane %v584, %v1195
        %1198 = vbcast.lane.b32.xlu0 %v1196, 256
        %v1199 = vpop.permute.xlu0 %1198
        %v1200 = vlaneseq
        %v1201 = vshrl.u32 %v1200, 7
        %v1202 = vsub.s32 1, %v1201
        %v1203 = vrot.slane %v570, %v1202
        %v1204 = vlaneseq
        %v1205 = vshrl.u32 %v1204, 7
        %v1206 = vsub.s32 1, %v1205
        %v1207 = vrot.slane %v571, %v1206
        %v1208 = vlaneseq
        %v1209 = vshrl.u32 %v1208, 7
        %v1210 = vsub.s32 1, %v1209
        %v1211 = vrot.slane %v572, %v1210
        %v1212 = vlaneseq
        %v1213 = vshrl.u32 %v1212, 7
        %v1214 = vsub.s32 1, %v1213
        %v1215 = vrot.slane %v573, %v1214
        %v1216 = vlaneseq
        %v1217 = vshrl.u32 %v1216, 7
        %v1218 = vsub.s32 1, %v1217
        %v1219 = vrot.slane %v574, %v1218
        %v1220 = vmul.f32 %v1171, %v1203
        %v1221 = vmul.f32 %v1178, %v1207
        %v1222 = vmul.f32 %v1185, %v1211
        %v1223 = vmul.f32 %v1192, %v1215
        %v1224 = vmul.f32 %v1199, %v1219
        %v1225 = vadd.f32 %v1155, %v1220
        %v1226 = vadd.f32 %v1156, %v1221
        %v1227 = vadd.f32 %v1157, %v1222
        %v1228 = vadd.f32 %v1158, %v1223
        %v1229 = vadd.f32 %v1159, %v1224
        %v1230 = vmul.f32 %v1171, %v1061
        %v1231 = vmul.f32 %v1178, %v1069
        %v1232 = vmul.f32 %v1185, %v1077
        %v1233 = vmul.f32 %v1192, %v1085
        %v1234 = vmul.f32 %v1199, %v1093
        %v1235 = vadd.f32 %v1160, %v1230
        %v1236 = vadd.f32 %v1161, %v1231
        %v1237 = vadd.f32 %v1162, %v1232
        %v1238 = vadd.f32 %v1163, %v1233
        %v1239 = vadd.f32 %v1164, %v1234
        %v1240 = vlaneseq
        %v1241 = vshrl.u32 %v1240, 7
        %v1242 = vsub.s32 2, %v1241
        %v1243 = vrot.slane %v580, %v1242
        %1245 = vbcast.lane.b32.xlu0 %v1243, 256
        %v1246 = vpop.permute.xlu0 %1245
        %v1247 = vlaneseq
        %v1248 = vshrl.u32 %v1247, 7
        %v1249 = vsub.s32 2, %v1248
        %v1250 = vrot.slane %v581, %v1249
        %1252 = vbcast.lane.b32.xlu0 %v1250, 256
        %v1253 = vpop.permute.xlu0 %1252
        %v1254 = vlaneseq
        %v1255 = vshrl.u32 %v1254, 7
        %v1256 = vsub.s32 2, %v1255
        %v1257 = vrot.slane %v582, %v1256
        %1259 = vbcast.lane.b32.xlu0 %v1257, 256
        %v1260 = vpop.permute.xlu0 %1259
        %v1261 = vlaneseq
        %v1262 = vshrl.u32 %v1261, 7
        %v1263 = vsub.s32 2, %v1262
        %v1264 = vrot.slane %v583, %v1263
        %1266 = vbcast.lane.b32.xlu0 %v1264, 256
        %v1267 = vpop.permute.xlu0 %1266
        %v1268 = vlaneseq
        %v1269 = vshrl.u32 %v1268, 7
        %v1270 = vsub.s32 2, %v1269
        %v1271 = vrot.slane %v584, %v1270
        %1273 = vbcast.lane.b32.xlu0 %v1271, 256
        %v1274 = vpop.permute.xlu0 %1273
        %v1275 = vlaneseq
        %v1276 = vshrl.u32 %v1275, 7
        %v1277 = vsub.s32 2, %v1276
        %v1278 = vrot.slane %v570, %v1277
        %v1279 = vlaneseq
        %v1280 = vshrl.u32 %v1279, 7
        %v1281 = vsub.s32 2, %v1280
        %v1282 = vrot.slane %v571, %v1281
        %v1283 = vlaneseq
        %v1284 = vshrl.u32 %v1283, 7
        %v1285 = vsub.s32 2, %v1284
        %v1286 = vrot.slane %v572, %v1285
        %v1287 = vlaneseq
        %v1288 = vshrl.u32 %v1287, 7
        %v1289 = vsub.s32 2, %v1288
        %v1290 = vrot.slane %v573, %v1289
        %v1291 = vlaneseq
        %v1292 = vshrl.u32 %v1291, 7
        %v1293 = vsub.s32 2, %v1292
        %v1294 = vrot.slane %v574, %v1293
        %v1295 = vmul.f32 %v1246, %v1278
        %v1296 = vmul.f32 %v1253, %v1282
        %v1297 = vmul.f32 %v1260, %v1286
        %v1298 = vmul.f32 %v1267, %v1290
        %v1299 = vmul.f32 %v1274, %v1294
        %v1300 = vadd.f32 %v1225, %v1295
        %v1301 = vadd.f32 %v1226, %v1296
        %v1302 = vadd.f32 %v1227, %v1297
        %v1303 = vadd.f32 %v1228, %v1298
        %v1304 = vadd.f32 %v1229, %v1299
        %v1305 = vmul.f32 %v1246, %v1062
        %v1306 = vmul.f32 %v1253, %v1070
        %v1307 = vmul.f32 %v1260, %v1078
        %v1308 = vmul.f32 %v1267, %v1086
        %v1309 = vmul.f32 %v1274, %v1094
        %v1310 = vadd.f32 %v1235, %v1305
        %v1311 = vadd.f32 %v1236, %v1306
        %v1312 = vadd.f32 %v1237, %v1307
        %v1313 = vadd.f32 %v1238, %v1308
        %v1314 = vadd.f32 %v1239, %v1309
        %v1315 = vlaneseq
        %v1316 = vshrl.u32 %v1315, 7
        %v1317 = vsub.s32 3, %v1316
        %v1318 = vrot.slane %v580, %v1317
        %1320 = vbcast.lane.b32.xlu0 %v1318, 256
        %v1321 = vpop.permute.xlu0 %1320
        %v1322 = vlaneseq
        %v1323 = vshrl.u32 %v1322, 7
        %v1324 = vsub.s32 3, %v1323
        %v1325 = vrot.slane %v581, %v1324
        %1327 = vbcast.lane.b32.xlu0 %v1325, 256
        %v1328 = vpop.permute.xlu0 %1327
        %v1329 = vlaneseq
        %v1330 = vshrl.u32 %v1329, 7
        %v1331 = vsub.s32 3, %v1330
        %v1332 = vrot.slane %v582, %v1331
        %1334 = vbcast.lane.b32.xlu0 %v1332, 256
        %v1335 = vpop.permute.xlu0 %1334
        %v1336 = vlaneseq
        %v1337 = vshrl.u32 %v1336, 7
        %v1338 = vsub.s32 3, %v1337
        %v1339 = vrot.slane %v583, %v1338
        %1341 = vbcast.lane.b32.xlu0 %v1339, 256
        %v1342 = vpop.permute.xlu0 %1341
        %v1343 = vlaneseq
        %v1344 = vshrl.u32 %v1343, 7
        %v1345 = vsub.s32 3, %v1344
        %v1346 = vrot.slane %v584, %v1345
        %1348 = vbcast.lane.b32.xlu0 %v1346, 256
        %v1349 = vpop.permute.xlu0 %1348
        %v1350 = vlaneseq
        %v1351 = vshrl.u32 %v1350, 7
        %v1352 = vsub.s32 3, %v1351
        %v1353 = vrot.slane %v570, %v1352
        %v1354 = vlaneseq
        %v1355 = vshrl.u32 %v1354, 7
        %v1356 = vsub.s32 3, %v1355
        %v1357 = vrot.slane %v571, %v1356
        %v1358 = vlaneseq
        %v1359 = vshrl.u32 %v1358, 7
        %v1360 = vsub.s32 3, %v1359
        %v1361 = vrot.slane %v572, %v1360
        %v1362 = vlaneseq
        %v1363 = vshrl.u32 %v1362, 7
        %v1364 = vsub.s32 3, %v1363
        %v1365 = vrot.slane %v573, %v1364
        %v1366 = vlaneseq
        %v1367 = vshrl.u32 %v1366, 7
        %v1368 = vsub.s32 3, %v1367
        %v1369 = vrot.slane %v574, %v1368
        %v1370 = vmul.f32 %v1321, %v1353
        %v1371 = vmul.f32 %v1328, %v1357
        %v1372 = vmul.f32 %v1335, %v1361
        %v1373 = vmul.f32 %v1342, %v1365
        %v1374 = vmul.f32 %v1349, %v1369
        %v1375 = vadd.f32 %v1300, %v1370
        %v1376 = vadd.f32 %v1301, %v1371
        %v1377 = vadd.f32 %v1302, %v1372
        %v1378 = vadd.f32 %v1303, %v1373
        %v1379 = vadd.f32 %v1304, %v1374
        %v1380 = vmul.f32 %v1321, %v1063
        %v1381 = vmul.f32 %v1328, %v1071
        %v1382 = vmul.f32 %v1335, %v1079
        %v1383 = vmul.f32 %v1342, %v1087
        %v1384 = vmul.f32 %v1349, %v1095
        %v1385 = vadd.f32 %v1310, %v1380
        %v1386 = vadd.f32 %v1311, %v1381
        %v1387 = vadd.f32 %v1312, %v1382
        %v1388 = vadd.f32 %v1313, %v1383
        %v1389 = vadd.f32 %v1314, %v1384
        %v1390 = vlaneseq
        %v1391 = vshrl.u32 %v1390, 7
        %v1392 = vsub.s32 4, %v1391
        %v1393 = vrot.slane %v580, %v1392
        %1395 = vbcast.lane.b32.xlu0 %v1393, 256
        %v1396 = vpop.permute.xlu0 %1395
        %v1397 = vlaneseq
        %v1398 = vshrl.u32 %v1397, 7
        %v1399 = vsub.s32 4, %v1398
        %v1400 = vrot.slane %v581, %v1399
        %1402 = vbcast.lane.b32.xlu0 %v1400, 256
        %v1403 = vpop.permute.xlu0 %1402
        %v1404 = vlaneseq
        %v1405 = vshrl.u32 %v1404, 7
        %v1406 = vsub.s32 4, %v1405
        %v1407 = vrot.slane %v582, %v1406
        %1409 = vbcast.lane.b32.xlu0 %v1407, 256
        %v1410 = vpop.permute.xlu0 %1409
        %v1411 = vlaneseq
        %v1412 = vshrl.u32 %v1411, 7
        %v1413 = vsub.s32 4, %v1412
        %v1414 = vrot.slane %v583, %v1413
        %1416 = vbcast.lane.b32.xlu0 %v1414, 256
        %v1417 = vpop.permute.xlu0 %1416
        %v1418 = vlaneseq
        %v1419 = vshrl.u32 %v1418, 7
        %v1420 = vsub.s32 4, %v1419
        %v1421 = vrot.slane %v584, %v1420
        %1423 = vbcast.lane.b32.xlu0 %v1421, 256
        %v1424 = vpop.permute.xlu0 %1423
        %v1425 = vlaneseq
        %v1426 = vshrl.u32 %v1425, 7
        %v1427 = vsub.s32 4, %v1426
        %v1428 = vrot.slane %v570, %v1427
        %v1429 = vlaneseq
        %v1430 = vshrl.u32 %v1429, 7
        %v1431 = vsub.s32 4, %v1430
        %v1432 = vrot.slane %v571, %v1431
        %v1433 = vlaneseq
        %v1434 = vshrl.u32 %v1433, 7
        %v1435 = vsub.s32 4, %v1434
        %v1436 = vrot.slane %v572, %v1435
        %v1437 = vlaneseq
        %v1438 = vshrl.u32 %v1437, 7
        %v1439 = vsub.s32 4, %v1438
        %v1440 = vrot.slane %v573, %v1439
        %v1441 = vlaneseq
        %v1442 = vshrl.u32 %v1441, 7
        %v1443 = vsub.s32 4, %v1442
        %v1444 = vrot.slane %v574, %v1443
        %v1445 = vmul.f32 %v1396, %v1428
        %v1446 = vmul.f32 %v1403, %v1432
        %v1447 = vmul.f32 %v1410, %v1436
        %v1448 = vmul.f32 %v1417, %v1440
        %v1449 = vmul.f32 %v1424, %v1444
        %v1450 = vadd.f32 %v1375, %v1445
        %v1451 = vadd.f32 %v1376, %v1446
        %v1452 = vadd.f32 %v1377, %v1447
        %v1453 = vadd.f32 %v1378, %v1448
        %v1454 = vadd.f32 %v1379, %v1449
        %v1455 = vmul.f32 %v1396, %v1064
        %v1456 = vmul.f32 %v1403, %v1072
        %v1457 = vmul.f32 %v1410, %v1080
        %v1458 = vmul.f32 %v1417, %v1088
        %v1459 = vmul.f32 %v1424, %v1096
        %v1460 = vadd.f32 %v1385, %v1455
        %v1461 = vadd.f32 %v1386, %v1456
        %v1462 = vadd.f32 %v1387, %v1457
        %v1463 = vadd.f32 %v1388, %v1458
        %v1464 = vadd.f32 %v1389, %v1459
        %v1465 = vlaneseq
        %v1466 = vshrl.u32 %v1465, 7
        %v1467 = vsub.s32 5, %v1466
        %v1468 = vrot.slane %v580, %v1467
        %1470 = vbcast.lane.b32.xlu0 %v1468, 256
        %v1471 = vpop.permute.xlu0 %1470
        %v1472 = vlaneseq
        %v1473 = vshrl.u32 %v1472, 7
        %v1474 = vsub.s32 5, %v1473
        %v1475 = vrot.slane %v581, %v1474
        %1477 = vbcast.lane.b32.xlu0 %v1475, 256
        %v1478 = vpop.permute.xlu0 %1477
        %v1479 = vlaneseq
        %v1480 = vshrl.u32 %v1479, 7
        %v1481 = vsub.s32 5, %v1480
        %v1482 = vrot.slane %v582, %v1481
        %1484 = vbcast.lane.b32.xlu0 %v1482, 256
        %v1485 = vpop.permute.xlu0 %1484
        %v1486 = vlaneseq
        %v1487 = vshrl.u32 %v1486, 7
        %v1488 = vsub.s32 5, %v1487
        %v1489 = vrot.slane %v583, %v1488
        %1491 = vbcast.lane.b32.xlu0 %v1489, 256
        %v1492 = vpop.permute.xlu0 %1491
        %v1493 = vlaneseq
        %v1494 = vshrl.u32 %v1493, 7
        %v1495 = vsub.s32 5, %v1494
        %v1496 = vrot.slane %v584, %v1495
        %1498 = vbcast.lane.b32.xlu0 %v1496, 256
        %v1499 = vpop.permute.xlu0 %1498
        %v1500 = vlaneseq
        %v1501 = vshrl.u32 %v1500, 7
        %v1502 = vsub.s32 5, %v1501
        %v1503 = vrot.slane %v570, %v1502
        %v1504 = vlaneseq
        %v1505 = vshrl.u32 %v1504, 7
        %v1506 = vsub.s32 5, %v1505
        %v1507 = vrot.slane %v571, %v1506
        %v1508 = vlaneseq
        %v1509 = vshrl.u32 %v1508, 7
        %v1510 = vsub.s32 5, %v1509
        %v1511 = vrot.slane %v572, %v1510
        %v1512 = vlaneseq
        %v1513 = vshrl.u32 %v1512, 7
        %v1514 = vsub.s32 5, %v1513
        %v1515 = vrot.slane %v573, %v1514
        %v1516 = vlaneseq
        %v1517 = vshrl.u32 %v1516, 7
        %v1518 = vsub.s32 5, %v1517
        %v1519 = vrot.slane %v574, %v1518
        %v1520 = vmul.f32 %v1471, %v1503
        %v1521 = vmul.f32 %v1478, %v1507
        %v1522 = vmul.f32 %v1485, %v1511
        %v1523 = vmul.f32 %v1492, %v1515
        %v1524 = vmul.f32 %v1499, %v1519
        %v1525 = vadd.f32 %v1450, %v1520
        %v1526 = vadd.f32 %v1451, %v1521
        %v1527 = vadd.f32 %v1452, %v1522
        %v1528 = vadd.f32 %v1453, %v1523
        %v1529 = vadd.f32 %v1454, %v1524
        %v1530 = vmul.f32 %v1471, %v1065
        %v1531 = vmul.f32 %v1478, %v1073
        %v1532 = vmul.f32 %v1485, %v1081
        %v1533 = vmul.f32 %v1492, %v1089
        %v1534 = vmul.f32 %v1499, %v1097
        %v1535 = vadd.f32 %v1460, %v1530
        %v1536 = vadd.f32 %v1461, %v1531
        %v1537 = vadd.f32 %v1462, %v1532
        %v1538 = vadd.f32 %v1463, %v1533
        %v1539 = vadd.f32 %v1464, %v1534
        %v1540 = vlaneseq
        %v1541 = vshrl.u32 %v1540, 7
        %v1542 = vsub.s32 6, %v1541
        %v1543 = vrot.slane %v580, %v1542
        %1545 = vbcast.lane.b32.xlu0 %v1543, 256
        %v1546 = vpop.permute.xlu0 %1545
        %v1547 = vlaneseq
        %v1548 = vshrl.u32 %v1547, 7
        %v1549 = vsub.s32 6, %v1548
        %v1550 = vrot.slane %v581, %v1549
        %1552 = vbcast.lane.b32.xlu0 %v1550, 256
        %v1553 = vpop.permute.xlu0 %1552
        %v1554 = vlaneseq
        %v1555 = vshrl.u32 %v1554, 7
        %v1556 = vsub.s32 6, %v1555
        %v1557 = vrot.slane %v582, %v1556
        %1559 = vbcast.lane.b32.xlu0 %v1557, 256
        %v1560 = vpop.permute.xlu0 %1559
        %v1561 = vlaneseq
        %v1562 = vshrl.u32 %v1561, 7
        %v1563 = vsub.s32 6, %v1562
        %v1564 = vrot.slane %v583, %v1563
        %1566 = vbcast.lane.b32.xlu0 %v1564, 256
        %v1567 = vpop.permute.xlu0 %1566
        %v1568 = vlaneseq
        %v1569 = vshrl.u32 %v1568, 7
        %v1570 = vsub.s32 6, %v1569
        %v1571 = vrot.slane %v584, %v1570
        %1573 = vbcast.lane.b32.xlu0 %v1571, 256
        %v1574 = vpop.permute.xlu0 %1573
        %v1575 = vlaneseq
        %v1576 = vshrl.u32 %v1575, 7
        %v1577 = vsub.s32 6, %v1576
        %v1578 = vrot.slane %v570, %v1577
        %v1579 = vlaneseq
        %v1580 = vshrl.u32 %v1579, 7
        %v1581 = vsub.s32 6, %v1580
        %v1582 = vrot.slane %v571, %v1581
        %v1583 = vlaneseq
        %v1584 = vshrl.u32 %v1583, 7
        %v1585 = vsub.s32 6, %v1584
        %v1586 = vrot.slane %v572, %v1585
        %v1587 = vlaneseq
        %v1588 = vshrl.u32 %v1587, 7
        %v1589 = vsub.s32 6, %v1588
        %v1590 = vrot.slane %v573, %v1589
        %v1591 = vlaneseq
        %v1592 = vshrl.u32 %v1591, 7
        %v1593 = vsub.s32 6, %v1592
        %v1594 = vrot.slane %v574, %v1593
        %v1595 = vmul.f32 %v1546, %v1578
        %v1596 = vmul.f32 %v1553, %v1582
        %v1597 = vmul.f32 %v1560, %v1586
        %v1598 = vmul.f32 %v1567, %v1590
        %v1599 = vmul.f32 %v1574, %v1594
        %v1600 = vadd.f32 %v1525, %v1595
        %v1601 = vadd.f32 %v1526, %v1596
        %v1602 = vadd.f32 %v1527, %v1597
        %v1603 = vadd.f32 %v1528, %v1598
        %v1604 = vadd.f32 %v1529, %v1599
        %v1605 = vmul.f32 %v1546, %v1066
        %v1606 = vmul.f32 %v1553, %v1074
        %v1607 = vmul.f32 %v1560, %v1082
        %v1608 = vmul.f32 %v1567, %v1090
        %v1609 = vmul.f32 %v1574, %v1098
        %v1610 = vadd.f32 %v1535, %v1605
        %v1611 = vadd.f32 %v1536, %v1606
        %v1612 = vadd.f32 %v1537, %v1607
        %v1613 = vadd.f32 %v1538, %v1608
        %v1614 = vadd.f32 %v1539, %v1609
        %v1615 = vlaneseq
        %v1616 = vshrl.u32 %v1615, 7
        %v1617 = vsub.s32 7, %v1616
        %v1618 = vrot.slane %v580, %v1617
        %1620 = vbcast.lane.b32.xlu0 %v1618, 256
        %v1621 = vpop.permute.xlu0 %1620
        %v1622 = vlaneseq
        %v1623 = vshrl.u32 %v1622, 7
        %v1624 = vsub.s32 7, %v1623
        %v1625 = vrot.slane %v581, %v1624
        %1627 = vbcast.lane.b32.xlu0 %v1625, 256
        %v1628 = vpop.permute.xlu0 %1627
        %v1629 = vlaneseq
        %v1630 = vshrl.u32 %v1629, 7
        %v1631 = vsub.s32 7, %v1630
        %v1632 = vrot.slane %v582, %v1631
        %1634 = vbcast.lane.b32.xlu0 %v1632, 256
        %v1635 = vpop.permute.xlu0 %1634
        %v1636 = vlaneseq
        %v1637 = vshrl.u32 %v1636, 7
        %v1638 = vsub.s32 7, %v1637
        %v1639 = vrot.slane %v583, %v1638
        %1641 = vbcast.lane.b32.xlu0 %v1639, 256
        %v1642 = vpop.permute.xlu0 %1641
        %v1643 = vlaneseq
        %v1644 = vshrl.u32 %v1643, 7
        %v1645 = vsub.s32 7, %v1644
        %v1646 = vrot.slane %v584, %v1645
        %1648 = vbcast.lane.b32.xlu0 %v1646, 256
        %v1649 = vpop.permute.xlu0 %1648
        %v1650 = vlaneseq
        %v1651 = vshrl.u32 %v1650, 7
        %v1652 = vsub.s32 7, %v1651
        %v1653 = vrot.slane %v570, %v1652
        %v1654 = vlaneseq
        %v1655 = vshrl.u32 %v1654, 7
        %v1656 = vsub.s32 7, %v1655
        %v1657 = vrot.slane %v571, %v1656
        %v1658 = vlaneseq
        %v1659 = vshrl.u32 %v1658, 7
        %v1660 = vsub.s32 7, %v1659
        %v1661 = vrot.slane %v572, %v1660
        %v1662 = vlaneseq
        %v1663 = vshrl.u32 %v1662, 7
        %v1664 = vsub.s32 7, %v1663
        %v1665 = vrot.slane %v573, %v1664
        %v1666 = vlaneseq
        %v1667 = vshrl.u32 %v1666, 7
        %v1668 = vsub.s32 7, %v1667
        %v1669 = vrot.slane %v574, %v1668
        %v1670 = vmul.f32 %v1621, %v1653
        %v1671 = vmul.f32 %v1628, %v1657
        %v1672 = vmul.f32 %v1635, %v1661
        %v1673 = vmul.f32 %v1642, %v1665
        %v1674 = vmul.f32 %v1649, %v1669
        %v1675 = vadd.f32 %v1600, %v1670
        %v1676 = vadd.f32 %v1601, %v1671
        %v1677 = vadd.f32 %v1602, %v1672
        %v1678 = vadd.f32 %v1603, %v1673
        %v1679 = vadd.f32 %v1604, %v1674
        %v1680 = vmul.f32 %v1621, %v1067
        %v1681 = vmul.f32 %v1628, %v1075
        %v1682 = vmul.f32 %v1635, %v1083
        %v1683 = vmul.f32 %v1642, %v1091
        %v1684 = vmul.f32 %v1649, %v1099
        %v1685 = vadd.f32 %v1610, %v1680
        %v1686 = vadd.f32 %v1611, %v1681
        %v1687 = vadd.f32 %v1612, %v1682
        %v1688 = vadd.f32 %v1613, %v1683
        %v1689 = vadd.f32 %v1614, %v1684
        %v1690 = vld [vmem:[%s6] sm:$0xff]
        %v1691 = vld [vmem:[%s6 + $0x8] sm:$0xff]
        %v1692 = vld [vmem:[%s6 + $0x10] sm:$0xff]
        %v1693 = vld [vmem:[%s6 + $0x18] sm:$0xff]
        %v1694 = vld [vmem:[#allocation8] sm:$0xff]
        %v1695 = vld [vmem:[#allocation8 + $0x8] sm:$0xff]
        %v1697 = vsel %vm674, %v1685, 0
        %v1700 = vsel %vm674, %v1686, 0
        %v1703 = vsel %vm674, %v1687, 0
        %v1706 = vsel %vm674, %v1688, 0
        %v1709 = vsel %vm674, %v1689, 0
        %1711 = vmatprep.subr.mxu0 0.0
        %1712 = vmatpush1.msra.mxu0 0.0
        %1713 = vmatprep.subr.mxu0 0.0
        %1714 = vmatpush1.msra.mxu0 0.0
        %1715 = vmatprep.subr.mxu0 0.0
        %1716 = vmatpush1.msra.mxu0 0.0
        %1717 = vmatprep.subr.mxu0 0.0
        %1718 = vmatpush1.msra.mxu0 0.0
        %1719 = vmatprep.subr.mxu0 0.0
        %1720 = vmatpush1.msra.mxu0 0.0
        %1721 = vmatprep.subr.mxu0 0.0
        %1722 = vmatpush1.msra.mxu0 0.0
        %1723 = vmatprep.subr.mxu0 0.0
        %1724 = vmatpush1.msra.mxu0 0.0
        %1725 = vmatprep.subr.mxu0 0.0
        %1726 = vmatpush1.msra.mxu0 0.0
        %1727 = vmatprep.subr.mxu0 0.0
        %1728 = vmatpush1.msra.mxu0 0.0
        %1729 = vmatprep.subr.mxu0 0.0
        %1730 = vmatpush1.msra.mxu0 0.0
        %1731 = vmatprep.subr.mxu0 0.0
        %1732 = vmatpush1.msra.mxu0 0.0
        %1733 = vmatprep.subr.mxu0 0.0
        %1734 = vmatpush1.msra.mxu0 0.0
        %1735 = vmatprep.subr.mxu0 0.0
        %1736 = vmatpush1.msra.mxu0 0.0
        %1737 = vmatprep.subr.mxu0 0.0
        %1738 = vmatpush1.msra.mxu0 0.0
        %1739 = vmatprep.subr.mxu0 0.0
        %1740 = vmatpush1.msra.mxu0 %v1695
        %1741 = vmatprep.subr.mxu0 0.0
        %1742 = vmatpush1.msra.mxu0 %v1694
        %1743 = vmatprep.subr.mxu0 0.0
        %1744 = vmatpush2.msra.mxu0 0.0
        %1745 = vmatprep.subr.mxu0 0.0
        %1746 = vmatpush2.msra.mxu0 0.0
        %1747 = vmatprep.subr.mxu0 0.0
        %1748 = vmatpush2.msra.mxu0 0.0
        %1749 = vmatprep.subr.mxu0 0.0
        %1750 = vmatpush2.msra.mxu0 0.0
        %1751 = vmatprep.subr.mxu0 0.0
        %1752 = vmatpush2.msra.mxu0 0.0
        %1753 = vmatprep.subr.mxu0 0.0
        %1754 = vmatpush2.msra.mxu0 0.0
        %1755 = vmatprep.subr.mxu0 0.0
        %1756 = vmatpush2.msra.mxu0 0.0
        %1757 = vmatprep.subr.mxu0 0.0
        %1758 = vmatpush2.msra.mxu0 0.0
        %1759 = vmatprep.subr.mxu0 0.0
        %1760 = vmatpush2.msra.mxu0 0.0
        %1761 = vmatprep.subr.mxu0 0.0
        %1762 = vmatpush2.msra.mxu0 0.0
        %1763 = vmatprep.subr.mxu0 0.0
        %1764 = vmatpush2.msra.mxu0 0.0
        %1765 = vmatprep.subr.mxu0 0.0
        %1766 = vmatpush2.msra.mxu0 0.0
        %1767 = vmatprep.subr.mxu0 0.0
        %1768 = vmatpush2.msra.mxu0 0.0
        %1769 = vmatprep.subr.mxu0 0.0
        %1770 = vmatpush2.msra.mxu0 0.0
        %1771 = vmatprep.subr.mxu0 0.0
        %1772 = vmatpush2.msra.mxu0 0.0
        %1773 = vmatprep.subr.mxu0 0.0
        %1774 = vmatpush2.msra.mxu0 0.0
        %1775 = vmatprep.mubr.f32.mxu0 0.0
        %1776 = vmatmul.mubr.f32.gmra.mxu0 %v1697
        %v1777 = vpop.f32.mrf.mxu0
        %v1778 = vadd.f32 0.0, %v1777
        %v1779 = vpop.f32.mrf.mxu0
        %1780 = vmatprep.mubr.f32.mxu0 0.0
        %1781 = vmatmul.mubr.f32.gmra.mxu0 %v1700
        %v1782 = vpop.f32.mrf.mxu0
        %v1783 = vadd.f32 0.0, %v1782
        %v1784 = vpop.f32.mrf.mxu0
        %1785 = vmatprep.mubr.f32.mxu0 0.0
        %1786 = vmatmul.mubr.f32.gmra.mxu0 %v1703
        %v1787 = vpop.f32.mrf.mxu0
        %v1788 = vadd.f32 0.0, %v1787
        %v1789 = vpop.f32.mrf.mxu0
        %1790 = vmatprep.mubr.f32.mxu0 0.0
        %1791 = vmatmul.mubr.f32.gmra.mxu0 %v1706
        %v1792 = vpop.f32.mrf.mxu0
        %v1793 = vadd.f32 0.0, %v1792
        %v1794 = vpop.f32.mrf.mxu0
        %1795 = vmatprep.mubr.f32.mxu0 0.0
        %1796 = vmatmul.mubr.f32.gmra.mxu0 %v1709
        %v1797 = vpop.f32.mrf.mxu0
        %v1798 = vadd.f32 0.0, %v1797
        %v1799 = vpop.f32.mrf.mxu0
        %1800 = vdwg.mxu0
        %vm1801 = vcmask 261120
        %v1803 = vsel %vm1801, %v1675, 0
        %v1806 = vsel %vm1801, %v1676, 0
        %v1809 = vsel %vm1801, %v1677, 0
        %v1812 = vsel %vm1801, %v1678, 0
        %v1815 = vsel %vm1801, %v1679, 0
        %1817 = vmatprep.subr.mxu0 0.0
        %1818 = vmatpush1.msra.mxu0 0.0
        %1819 = vmatprep.subr.mxu0 0.0
        %1820 = vmatpush1.msra.mxu0 0.0
        %1821 = vmatprep.subr.mxu0 0.0
        %1822 = vmatpush1.msra.mxu0 0.0
        %1823 = vmatprep.subr.mxu0 0.0
        %1824 = vmatpush1.msra.mxu0 0.0
        %1825 = vmatprep.subr.mxu0 0.0
        %1826 = vmatpush1.msra.mxu0 0.0
        %1827 = vmatprep.subr.mxu0 0.0
        %1828 = vmatpush1.msra.mxu0 0.0
        %1829 = vmatprep.subr.mxu0 0.0
        %1830 = vmatpush1.msra.mxu0 0.0
        %1831 = vmatprep.subr.mxu0 0.0
        %1832 = vmatpush1.msra.mxu0 0.0
        %1833 = vmatprep.subr.mxu0 0.0
        %1834 = vmatpush1.msra.mxu0 0.0
        %1835 = vmatprep.subr.mxu0 0.0
        %1836 = vmatpush1.msra.mxu0 0.0
        %1837 = vmatprep.subr.mxu0 0.0
        %1838 = vmatpush1.msra.mxu0 0.0
        %1839 = vmatprep.subr.mxu0 0.0
        %1840 = vmatpush1.msra.mxu0 0.0
        %1841 = vmatprep.subr.mxu0 0.0
        %1842 = vmatpush1.msra.mxu0 %v1693
        %1843 = vmatprep.subr.mxu0 0.0
        %1844 = vmatpush1.msra.mxu0 %v1692
        %1845 = vmatprep.subr.mxu0 0.0
        %1846 = vmatpush1.msra.mxu0 %v1691
        %1847 = vmatprep.subr.mxu0 0.0
        %1848 = vmatpush1.msra.mxu0 %v1690
        %1849 = vmatprep.subr.mxu0 0.0
        %1850 = vmatpush2.msra.mxu0 0.0
        %1851 = vmatprep.subr.mxu0 0.0
        %1852 = vmatpush2.msra.mxu0 0.0
        %1853 = vmatprep.subr.mxu0 0.0
        %1854 = vmatpush2.msra.mxu0 0.0
        %1855 = vmatprep.subr.mxu0 0.0
        %1856 = vmatpush2.msra.mxu0 0.0
        %1857 = vmatprep.subr.mxu0 0.0
        %1858 = vmatpush2.msra.mxu0 0.0
        %1859 = vmatprep.subr.mxu0 0.0
        %1860 = vmatpush2.msra.mxu0 0.0
        %1861 = vmatprep.subr.mxu0 0.0
        %1862 = vmatpush2.msra.mxu0 0.0
        %1863 = vmatprep.subr.mxu0 0.0
        %1864 = vmatpush2.msra.mxu0 0.0
        %1865 = vmatprep.subr.mxu0 0.0
        %1866 = vmatpush2.msra.mxu0 0.0
        %1867 = vmatprep.subr.mxu0 0.0
        %1868 = vmatpush2.msra.mxu0 0.0
        %1869 = vmatprep.subr.mxu0 0.0
        %1870 = vmatpush2.msra.mxu0 0.0
        %1871 = vmatprep.subr.mxu0 0.0
        %1872 = vmatpush2.msra.mxu0 0.0
        %1873 = vmatprep.subr.mxu0 0.0
        %1874 = vmatpush2.msra.mxu0 0.0
        %1875 = vmatprep.subr.mxu0 0.0
        %1876 = vmatpush2.msra.mxu0 0.0
        %1877 = vmatprep.subr.mxu0 0.0
        %1878 = vmatpush2.msra.mxu0 0.0
        %1879 = vmatprep.subr.mxu0 0.0
        %1880 = vmatpush2.msra.mxu0 0.0
        %1881 = vmatprep.mubr.f32.mxu0 0.0
        %1882 = vmatmul.mubr.f32.gmra.mxu0 %v1803
        %v1883 = vpop.f32.mrf.mxu0
        %v1884 = vadd.f32 %v1778, %v1883
        %v1885 = vpop.f32.mrf.mxu0
        %1886 = vmatprep.mubr.f32.mxu0 0.0
        %1887 = vmatmul.mubr.f32.gmra.mxu0 %v1806
        %v1888 = vpop.f32.mrf.mxu0
        %v1889 = vadd.f32 %v1783, %v1888
        %v1890 = vpop.f32.mrf.mxu0
        %1891 = vmatprep.mubr.f32.mxu0 0.0
        %1892 = vmatmul.mubr.f32.gmra.mxu0 %v1809
        %v1893 = vpop.f32.mrf.mxu0
        %v1894 = vadd.f32 %v1788, %v1893
        %v1895 = vpop.f32.mrf.mxu0
        %1896 = vmatprep.mubr.f32.mxu0 0.0
        %1897 = vmatmul.mubr.f32.gmra.mxu0 %v1812
        %v1898 = vpop.f32.mrf.mxu0
        %v1899 = vadd.f32 %v1793, %v1898
        %v1900 = vpop.f32.mrf.mxu0
        %1901 = vmatprep.mubr.f32.mxu0 0.0
        %1902 = vmatmul.mubr.f32.gmra.mxu0 %v1815
        %v1903 = vpop.f32.mrf.mxu0
        %v1904 = vadd.f32 %v1798, %v1903
        %v1905 = vpop.f32.mrf.mxu0
        %1906 = vdwg.mxu0
        %v1907 = vld [vmem:[%s8] sm:$0x1]
        %v1909 = vlaneseq
        %v1910 = vshrl.u32 %v1909, 7
        %v1911 = vsub.s32 0, %v1910
        %v1912 = vrot.slane %v1907, %v1911
        %v1914 = vadd.f32 %v1884, %v1912
        %v1915 = vadd.f32 %v1889, %v1912
        %v1916 = vadd.f32 %v1894, %v1912
        %v1917 = vadd.f32 %v1899, %v1912
        %v1918 = vadd.f32 %v1904, %v1912
        %v1919 = vmax.f32 %v1914, 0.0
        %v1920 = vmax.f32 %v1915, 0.0
        %v1921 = vmax.f32 %v1916, 0.0
        %v1922 = vmax.f32 %v1917, 0.0
        %v1923 = vmax.f32 %v1918, 0.0
        %s1924 = sld [smem:[#allocation2]]
        %s1925 = sadd.f32 %s1924, 1.0
        %v1926 = vstv %s1925
        %v1927 = vmul.f32 %v1926, %v570
        %v1928 = vmul.f32 %v1926, %v571
        %v1929 = vmul.f32 %v1926, %v572
        %v1930 = vmul.f32 %v1926, %v573
        %v1931 = vmul.f32 %v1926, %v574
        %v1932 = vadd.f32 %v1927, %v1919
        %v1933 = vadd.f32 %v1928, %v1920
        %v1934 = vadd.f32 %v1929, %v1921
        %v1935 = vadd.f32 %v1930, %v1922
        %v1936 = vadd.f32 %v1931, %v1923
        %v1937 = vld [vmem:[#allocation9] sm:$0xff]
        %v1938 = vld [vmem:[#allocation9 + $0x8] sm:$0xff]
        %v1939 = vld [vmem:[#allocation9 + $0x10] sm:$0xff]
        %v1940 = vld [vmem:[#allocation9 + $0x18] sm:$0xff]
        %v1941 = vld [vmem:[%s10] sm:$0x1]
        %v1943 = vlaneseq
        %v1944 = vshrl.u32 %v1943, 7
        %v1945 = vsub.s32 0, %v1944
        %v1946 = vrot.slane %v1941, %v1945
        %v1949 = vsel %vm1801, %v1932, 0
        %v1952 = vsel %vm1801, %v1933, 0
        %v1955 = vsel %vm1801, %v1934, 0
        %v1958 = vsel %vm1801, %v1935, 0
        %v1961 = vsel %vm1801, %v1936, 0
        %1963 = vmatprep.subr.mxu0 0.0
        %1964 = vmatpush1.msra.mxu0 0.0
        %1965 = vmatprep.subr.mxu0 0.0
        %1966 = vmatpush1.msra.mxu0 0.0
        %1967 = vmatprep.subr.mxu0 0.0
        %1968 = vmatpush1.msra.mxu0 0.0
        %1969 = vmatprep.subr.mxu0 0.0
        %1970 = vmatpush1.msra.mxu0 0.0
        %1971 = vmatprep.subr.mxu0 0.0
        %1972 = vmatpush1.msra.mxu0 0.0
        %1973 = vmatprep.subr.mxu0 0.0
        %1974 = vmatpush1.msra.mxu0 0.0
        %1975 = vmatprep.subr.mxu0 0.0
        %1976 = vmatpush1.msra.mxu0 0.0
        %1977 = vmatprep.subr.mxu0 0.0
        %1978 = vmatpush1.msra.mxu0 0.0
        %1979 = vmatprep.subr.mxu0 0.0
        %1980 = vmatpush1.msra.mxu0 0.0
        %1981 = vmatprep.subr.mxu0 0.0
        %1982 = vmatpush1.msra.mxu0 0.0
        %1983 = vmatprep.subr.mxu0 0.0
        %1984 = vmatpush1.msra.mxu0 0.0
        %1985 = vmatprep.subr.mxu0 0.0
        %1986 = vmatpush1.msra.mxu0 0.0
        %1987 = vmatprep.subr.mxu0 0.0
        %1988 = vmatpush1.msra.mxu0 %v1940
        %1989 = vmatprep.subr.mxu0 0.0
        %1990 = vmatpush1.msra.mxu0 %v1939
        %1991 = vmatprep.subr.mxu0 0.0
        %1992 = vmatpush1.msra.mxu0 %v1938
        %1993 = vmatprep.subr.mxu0 0.0
        %1994 = vmatpush1.msra.mxu0 %v1937
        %1995 = vmatprep.subr.mxu0 0.0
        %1996 = vmatpush2.msra.mxu0 0.0
        %1997 = vmatprep.subr.mxu0 0.0
        %1998 = vmatpush2.msra.mxu0 0.0
        %1999 = vmatprep.subr.mxu0 0.0
        %2000 = vmatpush2.msra.mxu0 0.0
        %2001 = vmatprep.subr.mxu0 0.0
        %2002 = vmatpush2.msra.mxu0 0.0
        %2003 = vmatprep.subr.mxu0 0.0
        %2004 = vmatpush2.msra.mxu0 0.0
        %2005 = vmatprep.subr.mxu0 0.0
        %2006 = vmatpush2.msra.mxu0 0.0
        %2007 = vmatprep.subr.mxu0 0.0
        %2008 = vmatpush2.msra.mxu0 0.0
        %2009 = vmatprep.subr.mxu0 0.0
        %2010 = vmatpush2.msra.mxu0 0.0
        %2011 = vmatprep.subr.mxu0 0.0
        %2012 = vmatpush2.msra.mxu0 0.0
        %2013 = vmatprep.subr.mxu0 0.0
        %2014 = vmatpush2.msra.mxu0 0.0
        %2015 = vmatprep.subr.mxu0 0.0
        %2016 = vmatpush2.msra.mxu0 0.0
        %2017 = vmatprep.subr.mxu0 0.0
        %2018 = vmatpush2.msra.mxu0 0.0
        %2019 = vmatprep.subr.mxu0 0.0
        %2020 = vmatpush2.msra.mxu0 0.0
        %2021 = vmatprep.subr.mxu0 0.0
        %2022 = vmatpush2.msra.mxu0 0.0
        %2023 = vmatprep.subr.mxu0 0.0
        %2024 = vmatpush2.msra.mxu0 0.0
        %2025 = vmatprep.subr.mxu0 0.0
        %2026 = vmatpush2.msra.mxu0 0.0
        %2027 = vmatprep.mubr.f32.mxu0 0.0
        %2028 = vmatmul.mubr.f32.gmra.mxu0 %v1949
        %v2029 = vpop.f32.mrf.mxu0
        %v2030 = vadd.f32 %v1946, %v2029
        %v2031 = vpop.f32.mrf.mxu0
        %2032 = vmatprep.mubr.f32.mxu0 0.0
        %2033 = vmatmul.mubr.f32.gmra.mxu0 %v1952
        %v2034 = vpop.f32.mrf.mxu0
        %v2035 = vadd.f32 %v1946, %v2034
        %v2036 = vpop.f32.mrf.mxu0
        %2037 = vmatprep.mubr.f32.mxu0 0.0
        %2038 = vmatmul.mubr.f32.gmra.mxu0 %v1955
        %v2039 = vpop.f32.mrf.mxu0
        %v2040 = vadd.f32 %v1946, %v2039
        %v2041 = vpop.f32.mrf.mxu0
        %2042 = vmatprep.mubr.f32.mxu0 0.0
        %2043 = vmatmul.mubr.f32.gmra.mxu0 %v1958
        %v2044 = vpop.f32.mrf.mxu0
        %v2045 = vadd.f32 %v1946, %v2044
        %v2046 = vpop.f32.mrf.mxu0
        %2047 = vmatprep.mubr.f32.mxu0 0.0
        %2048 = vmatmul.mubr.f32.gmra.mxu0 %v1961
        %v2049 = vpop.f32.mrf.mxu0
        %v2050 = vadd.f32 %v1946, %v2049
        %v2051 = vpop.f32.mrf.mxu0
        %2052 = vdwg.mxu0
        %v2053 = vmax.f32 %v2030, 0.0
        %v2054 = vmax.f32 %v2035, 0.0
        %v2055 = vmax.f32 %v2040, 0.0
        %v2056 = vmax.f32 %v2045, 0.0
        %v2057 = vmax.f32 %v2050, 0.0
        %v2058 = vld [vmem:[#allocation11] sm:$0xff]
        %v2059 = vld [vmem:[#allocation11 + $0x8] sm:$0xff]
        %v2060 = vld [vmem:[#allocation11 + $0x10] sm:$0xff]
        %v2061 = vld [vmem:[#allocation11 + $0x18] sm:$0xff]
        %v2062 = vld [vmem:[%s12] sm:$0x1]
        %v2064 = vlaneseq
        %v2065 = vshrl.u32 %v2064, 7
        %v2066 = vsub.s32 0, %v2065
        %v2067 = vrot.slane %v2062, %v2066
        %v2070 = vsel %vm1801, %v2053, 0
        %v2073 = vsel %vm1801, %v2054, 0
        %v2076 = vsel %vm1801, %v2055, 0
        %v2079 = vsel %vm1801, %v2056, 0
        %v2082 = vsel %vm1801, %v2057, 0
        %2084 = vmatprep.subr.mxu0 0.0
        %2085 = vmatpush1.msra.mxu0 0.0
        %2086 = vmatprep.subr.mxu0 0.0
        %2087 = vmatpush1.msra.mxu0 0.0
        %2088 = vmatprep.subr.mxu0 0.0
        %2089 = vmatpush1.msra.mxu0 0.0
        %2090 = vmatprep.subr.mxu0 0.0
        %2091 = vmatpush1.msra.mxu0 0.0
        %2092 = vmatprep.subr.mxu0 0.0
        %2093 = vmatpush1.msra.mxu0 0.0
        %2094 = vmatprep.subr.mxu0 0.0
        %2095 = vmatpush1.msra.mxu0 0.0
        %2096 = vmatprep.subr.mxu0 0.0
        %2097 = vmatpush1.msra.mxu0 0.0
        %2098 = vmatprep.subr.mxu0 0.0
        %2099 = vmatpush1.msra.mxu0 0.0
        %2100 = vmatprep.subr.mxu0 0.0
        %2101 = vmatpush1.msra.mxu0 0.0
        %2102 = vmatprep.subr.mxu0 0.0
        %2103 = vmatpush1.msra.mxu0 0.0
        %2104 = vmatprep.subr.mxu0 0.0
        %2105 = vmatpush1.msra.mxu0 0.0
        %2106 = vmatprep.subr.mxu0 0.0
        %2107 = vmatpush1.msra.mxu0 0.0
        %2108 = vmatprep.subr.mxu0 0.0
        %2109 = vmatpush1.msra.mxu0 %v2061
        %2110 = vmatprep.subr.mxu0 0.0
        %2111 = vmatpush1.msra.mxu0 %v2060
        %2112 = vmatprep.subr.mxu0 0.0
        %2113 = vmatpush1.msra.mxu0 %v2059
        %2114 = vmatprep.subr.mxu0 0.0
        %2115 = vmatpush1.msra.mxu0 %v2058
        %2116 = vmatprep.subr.mxu0 0.0
        %2117 = vmatpush2.msra.mxu0 0.0
        %2118 = vmatprep.subr.mxu0 0.0
        %2119 = vmatpush2.msra.mxu0 0.0
        %2120 = vmatprep.subr.mxu0 0.0
        %2121 = vmatpush2.msra.mxu0 0.0
        %2122 = vmatprep.subr.mxu0 0.0
        %2123 = vmatpush2.msra.mxu0 0.0
        %2124 = vmatprep.subr.mxu0 0.0
        %2125 = vmatpush2.msra.mxu0 0.0
        %2126 = vmatprep.subr.mxu0 0.0
        %2127 = vmatpush2.msra.mxu0 0.0
        %2128 = vmatprep.subr.mxu0 0.0
        %2129 = vmatpush2.msra.mxu0 0.0
        %2130 = vmatprep.subr.mxu0 0.0
        %2131 = vmatpush2.msra.mxu0 0.0
        %2132 = vmatprep.subr.mxu0 0.0
        %2133 = vmatpush2.msra.mxu0 0.0
        %2134 = vmatprep.subr.mxu0 0.0
        %2135 = vmatpush2.msra.mxu0 0.0
        %2136 = vmatprep.subr.mxu0 0.0
        %2137 = vmatpush2.msra.mxu0 0.0
        %2138 = vmatprep.subr.mxu0 0.0
        %2139 = vmatpush2.msra.mxu0 0.0
        %2140 = vmatprep.subr.mxu0 0.0
        %2141 = vmatpush2.msra.mxu0 0.0
        %2142 = vmatprep.subr.mxu0 0.0
        %2143 = vmatpush2.msra.mxu0 0.0
        %2144 = vmatprep.subr.mxu0 0.0
        %2145 = vmatpush2.msra.mxu0 0.0
        %2146 = vmatprep.subr.mxu0 0.0
        %2147 = vmatpush2.msra.mxu0 0.0
        %2148 = vmatprep.mubr.f32.mxu0 0.0
        %2149 = vmatmul.mubr.f32.gmra.mxu0 %v2070
        %v2150 = vpop.f32.mrf.mxu0
        %v2151 = vadd.f32 %v2067, %v2150
        %v2152 = vpop.f32.mrf.mxu0
        %2153 = vmatprep.mubr.f32.mxu0 0.0
        %2154 = vmatmul.mubr.f32.gmra.mxu0 %v2073
        %v2155 = vpop.f32.mrf.mxu0
        %v2156 = vadd.f32 %v2067, %v2155
        %v2157 = vpop.f32.mrf.mxu0
        %2158 = vmatprep.mubr.f32.mxu0 0.0
        %2159 = vmatmul.mubr.f32.gmra.mxu0 %v2076
        %v2160 = vpop.f32.mrf.mxu0
        %v2161 = vadd.f32 %v2067, %v2160
        %v2162 = vpop.f32.mrf.mxu0
        %2163 = vmatprep.mubr.f32.mxu0 0.0
        %2164 = vmatmul.mubr.f32.gmra.mxu0 %v2079
        %v2165 = vpop.f32.mrf.mxu0
        %v2166 = vadd.f32 %v2067, %v2165
        %v2167 = vpop.f32.mrf.mxu0
        %2168 = vmatprep.mubr.f32.mxu0 0.0
        %2169 = vmatmul.mubr.f32.gmra.mxu0 %v2082
        %v2170 = vpop.f32.mrf.mxu0
        %v2171 = vadd.f32 %v2067, %v2170
        %v2172 = vpop.f32.mrf.mxu0
        %2173 = vdwg.mxu0
        %v2174 = vmax.f32 %v2151, 0.0
        %v2175 = vmax.f32 %v2156, 0.0
        %v2176 = vmax.f32 %v2161, 0.0
        %v2177 = vmax.f32 %v2166, 0.0
        %v2178 = vmax.f32 %v2171, 0.0
        %2179 = vst.msk [vmem:[%s550] sm:$0xff] %vm1801, %v2174
        %2180 = vst.msk [vmem:[%s550 + $0x8] sm:$0xff] %vm1801, %v2175
        %2181 = vst.msk [vmem:[%s550 + $0x10] sm:$0xff] %vm1801, %v2176
        %2182 = vst.msk [vmem:[%s550 + $0x18] sm:$0xff] %vm1801, %v2177
        %2183 = vst.msk [vmem:[%s550 + $0x20] sm:$0xff] %vm1801, %v2178
        %s2184 = sand.u32 %s329, 1
        %s2185 = scalar_lea.sflag [#allocation5], %s2184
        %s2186 = sand.u32 %s329, 1
        %s2187 = smul.addr %s2186, 40
        %s2188 = scalar_lea.vmem [#allocation12], %s2187
        // Predicated region
        $region93: #{tpu_custom_call.1} parent=71 // pred_check
          %p2189 = pneg %p339
        $region94: #{tpu_custom_call.1} parent=71 // pred_check_branch
          %2191 = sbr.rel (%p2189) target = $region96
        $region95: #{tpu_custom_call.1} parent=71 // pred_region
          %s2192 = smul.u32 5, %s33
          %s2194 = ssub.s32 640, 640
          %2195 = vsyncadd %s2185, %s2194
          %s2196 = smul.addr %s2192, 128
          %s2197 = scalar_lea.hbm %s13, %s2196
          %s2198 = sshll.u32 %s2188, 4
          %s2199 = int_to_ptr.vmem [resolvable:$true] %s2198
          %2204 = dma.vmem_to_hbm [thread:$0]  %s2199, 640, %s2197, %s2185, 128, 128, 8
        $region96: #{tpu_custom_call.1} parent=71 // pred_fallthru
          _
      $region72: #{tpu_custom_call.1} parent=5 // pred_fallthru
        _
      %p2205 = scmp.le.s32.totalorder 2, %s28
      // Predicated region
      $region97: #{tpu_custom_call.1} parent=5 // pred_check
        %p2206 = pneg %p2205
      $region98: #{tpu_custom_call.1} parent=5 // pred_check_branch
        %2208 = sbr.rel (%p2206) target = $region100
      $region99: #{tpu_custom_call.1} parent=5 // pred_region
        %s2209 = ssub.s32 %s28, 2
        // Predicated region
        $region101: #{tpu_custom_call.1} parent=99 // pred_check
          %p2210 = pneg %p345
        $region102: #{tpu_custom_call.1} parent=99 // pred_check_branch
          %2212 = sbr.rel (%p2210) target = $region104
        $region103: #{tpu_custom_call.1} parent=99 // pred_region
          %s2213 = sand.u32 %s330, 1
          %s2214 = scalar_lea.sflag [#allocation5], %s2213
          %s2215 = sand.u32 %s330, 1
          %s2216 = smul.addr %s2215, 40
          %s2217 = scalar_lea.vmem [#allocation12], %s2216
          %2218 = dma.done %s2214, 640
        $region104: #{tpu_custom_call.1} parent=99 // pred_fallthru
          _
      $region100: #{tpu_custom_call.1} parent=5 // pred_fallthru
        _
    $region6: #{tpu_custom_call.1} parent=1 // loop_footer
      %s32 = sadd.s32 1, %s28
    $region7: #{tpu_custom_call.1} parent=1 // loop_footer_branch
      %27 = sbr.rel target = $region3
    $region8: #{tpu_custom_call.1} parent=1 // loop_exit
      _
    %2219 = vsyncpa [#allocation4], 1
    %s2220 = scalar_lea.sflag [#allocation4], 1
    %2221 = vsyncpa %s2220, 1
    %2222 = vsyncpa [#allocation7], 1
    %2223 = vsyncpa [#allocation10], 1
    %2224 = vsyncpa [#allocation5], 1
    %s2225 = scalar_lea.sflag [#allocation5], 1
    %2226 = vsyncpa %s2225, 1

</llo_original>
